<compile_context>
chip_gen: v7x
topology: tpu7x:2x2x1
jax: 0.10.0
libtpu: 0.0.40
codegen_flags: <defaults>
</compile_context>

<pallas_src>
import functools

import jax
import jax.numpy as jnp
from jax.experimental import pallas as pl
from jax.experimental.pallas import tpu as pltpu


def _round_up(a, b):
    return (a + b - 1) // b * b


def _cdiv(a, b):
    return -(-a // b)


def _make_kernel(k, wpp, tm, c1):
    taps = [(dh, dw) for dh in range(k) for dw in range(k)]

    def kernel(xm_ref, xh_ref, w_ref, b_ref, o_ref, xwin_ref, patch_ref):
        # xm_ref   : (tm, C1)        bf16  wide-row window for this m-tile
        # xh_ref   : (tm, C1)        bf16  next window (halo rows)
        # w_ref    : (k*k*C1, C2p)   bf16  BN-scale-folded, im2col-ordered weight
        # b_ref    : (1, C2p)        f32   folded BN bias
        # o_ref    : (tm, C2p)       bf16  output tile
        # xwin_ref : (2*tm, C1)      bf16  scratch: main + halo window, contiguous
        # patch_ref: (tm, k*k*C1)    bf16  scratch: im2col patch tile
        xwin_ref[0:tm, :] = xm_ref[...]
        xwin_ref[tm:2 * tm, :] = xh_ref[...]
        for t, (dh, dw) in enumerate(taps):
            start = dh * wpp + dw            # static; dh*wpp is sublane aligned
            patch_ref[:, t * c1:(t + 1) * c1] = xwin_ref[start:start + tm, :]
        # Single MXU pass over the full k*k*C1 contraction, f32 accumulation.
        y = jnp.dot(patch_ref[...], w_ref[...],
                    preferred_element_type=jnp.float32)
        y = y + b_ref[...]                   # folded BN bias
        o_ref[...] = (y * jax.nn.sigmoid(y)).astype(o_ref.dtype)   # SiLU

    return kernel


@functools.partial(jax.jit, static_argnames=("k", "s", "p", "out_dtype"))
def conv_forward(x, weight, gamma, beta, running_mean, running_var,
                 *, k, s, p, eps=1e-5, out_dtype=jnp.bfloat16):
    """Conv.forward: SiLU(BN(Conv2d(x))).  x is NCHW, returns NCHW."""
    n, c1, h, w = x.shape
    c2 = weight.shape[0]
    kk = k * k

    # Dense (stride-1) output geometry; stride is applied by subsampling below.
    ho = h + 2 * p - k + 1
    wo = w + 2 * p - k + 1
    hp = h + 2 * p
    wpp = _round_up(w + 2 * p, 8)     # wide width: sublane-aligned tap offsets
    c2p = _round_up(c2, 128)          # lane-dense output stores

    max_start = (k - 1) * wpp + (k - 1)
    mi = ho * wpp                     # wide output rows per image

    # Tile the wide rows: >= 2 m-tiles per image, tm capped for v7x VMEM,
    # and tm > max_start so the halo never exceeds one neighbouring window.
    tm_min = _round_up(max_start + 1, 8)
    tm_cap = max(2048, tm_min)
    tiles_target = max(2, _cdiv(mi, tm_cap))
    tm = max(_round_up(_cdiv(mi, tiles_target), 8), tm_min)
    num_m_tiles = max(2, _cdiv(mi, tm))
    mi_pad = num_m_tiles * tm

    # Rows the kernel may touch: all main windows + one trailing halo window.
    rows_needed = (num_m_tiles + 1) * tm
    extra_h = _cdiv(max(0, rows_needed - hp * wpp), wpp)

    # Activation prep in one pass: NCHW -> NHWC bf16 + a single zero-pad that
    # covers spatial padding, the width round-up and the trailing halo rows.
    xnhwc = jnp.transpose(x, (0, 2, 3, 1)).astype(jnp.bfloat16)
    xnhwc = jnp.pad(xnhwc, ((0, 0),
                            (p, p + extra_h),
                            (p, p + (wpp - (w + 2 * p))),
                            (0, 0)))
    xf = xnhwc.reshape(n, (hp + extra_h) * wpp, c1)

    # Fold BN scale into the conv weight (im2col order); keep only the bias.
    scale = gamma * jax.lax.rsqrt(running_var + eps)                  # (C2,)
    bias = (beta - running_mean * scale).reshape(1, c2)
    bias = jnp.pad(bias, ((0, 0), (0, c2p - c2))).astype(jnp.float32)
    wf = weight.astype(jnp.float32) * scale[:, None, None, None]      # OIHW
    wf = jnp.transpose(wf, (2, 3, 1, 0)).reshape(kk * c1, c2)         # (kk*C1,C2)
    wf = jnp.pad(wf, ((0, 0), (0, c2p - c2))).astype(jnp.bfloat16)

    kernel = _make_kernel(k, wpp, tm, c1)

    # VMEM budget from the actual buffer sum (double-buffered blocks + scratch).
    vmem_bytes = (2 * 2 * tm * c1 * 2        # xm + xh blocks (bf16, 2 buffers)
                  + 2 * kk * c1 * c2p * 2    # weight
                  + 2 * c2p * 4              # bias
                  + 2 * tm * c2p * 2         # output tile
                  + (2 * tm * c1 + tm * kk * c1) * 2)   # scratch
    vmem_limit = int(min(64 * 2**20, max(16 * 2**20, 2 * vmem_bytes)))

    out_wide = pl.pallas_call(
        kernel,
        out_shape=jax.ShapeDtypeStruct((n, mi_pad, c2p), jnp.bfloat16),
        grid=(n, num_m_tiles),
        in_specs=[
            pl.BlockSpec((None, tm, c1), lambda nb, mb: (nb, mb, 0)),      # main
            pl.BlockSpec((None, tm, c1), lambda nb, mb: (nb, mb + 1, 0)),  # halo
            pl.BlockSpec((kk * c1, c2p), lambda nb, mb: (0, 0)),
            pl.BlockSpec((1, c2p), lambda nb, mb: (0, 0)),
        ],
        out_specs=pl.BlockSpec((None, tm, c2p), lambda nb, mb: (nb, mb, 0)),
        scratch_shapes=[
            pltpu.VMEM((2 * tm, c1), jnp.bfloat16),
            pltpu.VMEM((tm, kk * c1), jnp.bfloat16),
        ],
        compiler_params=pltpu.CompilerParams(
            dimension_semantics=("parallel", "parallel"),
            vmem_limit_bytes=vmem_limit),
    )(xf, xf, wf, bias)

    # Wide rows -> dense NHWC -> apply stride -> NCHW.  (For chained layers one
    # would keep the NHWC bf16 output and skip the transpose entirely.)
    out = out_wide[:, :mi, :c2].reshape(n, ho, wpp, c2)[:, :, :wo, :]
    if s > 1:
        out = out[:, ::s, ::s, :]
    return jnp.transpose(out, (0, 3, 1, 2)).astype(out_dtype)


def reference_forward(x, weight, gamma, beta, running_mean, running_var,
                      *, k, s, p, eps=1e-5):
    y = jax.lax.conv_general_dilated(
        x, weight, window_strides=(s, s), padding=((p, p), (p, p)),
        dimension_numbers=("NCHW", "OIHW", "NCHW"))
    scale = (gamma / jnp.sqrt(running_var + eps)).reshape(1, -1, 1, 1)
    bias = (beta - running_mean * gamma / jnp.sqrt(running_var + eps)
            ).reshape(1, -1, 1, 1)
    y = y * scale + bias
    return y * jax.nn.sigmoid(y)


if __name__ == "__main__":
    # Module config: Conv(c1=4, c2=8, k=3, s=1) -> autopad p=1, g=1, act=SiLU
    c1, c2, k, s = 4, 8, 3, 1
    p = k // 2  # autopad
    n, h, w = 2, 16, 16

    key = jax.random.PRNGKey(0)
    kx, kw_, kg, kb, km, kv = jax.random.split(key, 6)

    x = jax.random.normal(kx, (n, c1, h, w), dtype=jnp.float32)
    weight = jax.random.normal(kw_, (c2, c1, k, k), dtype=jnp.float32) * 0.1
    gamma = 1.0 + 0.1 * jax.random.normal(kg, (c2,), dtype=jnp.float32)
    beta = 0.1 * jax.random.normal(kb, (c2,), dtype=jnp.float32)
    running_mean = 0.1 * jax.random.normal(km, (c2,), dtype=jnp.float32)
    running_var = jnp.abs(jax.random.normal(kv, (c2,), dtype=jnp.float32)) + 0.5

    out = conv_forward(x, weight, gamma, beta, running_mean, running_var,
                       k=k, s=s, p=p)
    out = jax.block_until_ready(out)

    ref = reference_forward(x, weight, gamma, beta, running_mean, running_var,
                            k=k, s=s, p=p)
    assert out.shape == (n, c2, h, w), out.shape
    # bf16 activations / weights / output -> loosened tolerance vs f32 reference.
    assert jnp.allclose(out.astype(jnp.float32), ref, rtol=3e-2, atol=3e-2)

    print("KERNEL_OK")
</pallas_src>

<mosaic_0001>
module attributes {stable_mosaic.version = 11 : i64} {
  func.func @kernel(%arg0: i32, %arg1: i32, %arg2: memref<1x192x4xbf16, #tpu.memory_space<vmem>>, %arg3: memref<1x192x4xbf16, #tpu.memory_space<vmem>>, %arg4: memref<36x128xbf16, #tpu.memory_space<vmem>>, %arg5: memref<1x128xf32, #tpu.memory_space<vmem>>, %arg6: memref<1x192x128xbf16, #tpu.memory_space<vmem>>, %arg7: memref<384x4xbf16, #tpu.memory_space<vmem>>, %arg8: memref<192x36xbf16, #tpu.memory_space<vmem>>) attributes {dimension_semantics = [#tpu.dimension_semantics<parallel>, #tpu.dimension_semantics<parallel>], iteration_bounds = array<i64: 2, 2>, scalar_prefetch = 0 : i64, scratch_operands = 2 : i64, tpu.core_type = #tpu.core_type<tc>, window_params = [{transform_indices = @transform_0, window_bounds = array<i64: 1, 192, 4>}, {transform_indices = @transform_1, window_bounds = array<i64: 1, 192, 4>}, {pipeline_mode = #tpu.pipeline_mode<synchronous>, transform_indices = @transform_2, window_bounds = array<i64: 36, 128>}, {pipeline_mode = #tpu.pipeline_mode<synchronous>, transform_indices = @transform_3, window_bounds = array<i64: 1, 128>}, {transform_indices = @transform_4, window_bounds = array<i64: 1, 192, 128>}]} {
    %c0 = arith.constant 0 : index
    %c0_0 = arith.constant 0 : index
    %c0_1 = arith.constant 0 : index
    %0 = vector.load %arg2[%c0, %c0_0, %c0_1] : memref<1x192x4xbf16, #tpu.memory_space<vmem>>, vector<1x192x4xbf16>
    %1 = vector.shape_cast %0 : vector<1x192x4xbf16> to vector<192x4xbf16>
    %c0_2 = arith.constant 0 : index
    %c0_3 = arith.constant 0 : index
    %2 = vector.load %arg7[%c0_2, %c0_3] : memref<384x4xbf16, #tpu.memory_space<vmem>>, vector<192x4xbf16>
    tpu.vector_store %arg7[%c0_2, %c0_3], %1 {strides = array<i32>} : memref<384x4xbf16, #tpu.memory_space<vmem>>, vector<192x4xbf16>,
    %c0_4 = arith.constant 0 : index
    %c0_5 = arith.constant 0 : index
    %c0_6 = arith.constant 0 : index
    %3 = vector.load %arg3[%c0_4, %c0_5, %c0_6] : memref<1x192x4xbf16, #tpu.memory_space<vmem>>, vector<1x192x4xbf16>
    %4 = vector.shape_cast %3 : vector<1x192x4xbf16> to vector<192x4xbf16>
    %c192 = arith.constant 192 : index
    %c0_7 = arith.constant 0 : index
    %5 = vector.load %arg7[%c192, %c0_7] : memref<384x4xbf16, #tpu.memory_space<vmem>>, vector<192x4xbf16>
    tpu.vector_store %arg7[%c192, %c0_7], %4 {strides = array<i32>} : memref<384x4xbf16, #tpu.memory_space<vmem>>, vector<192x4xbf16>,
    %c0_8 = arith.constant 0 : index
    %c0_9 = arith.constant 0 : index
    %6 = vector.load %arg7[%c0_8, %c0_9] : memref<384x4xbf16, #tpu.memory_space<vmem>>, vector<192x4xbf16>
    %c0_10 = arith.constant 0 : index
    %c0_11 = arith.constant 0 : index
    %7 = vector.load %arg8[%c0_10, %c0_11] : memref<192x36xbf16, #tpu.memory_space<vmem>>, vector<192x4xbf16>
    tpu.vector_store %arg8[%c0_10, %c0_11], %6 {strides = array<i32>} : memref<192x36xbf16, #tpu.memory_space<vmem>>, vector<192x4xbf16>,
    %c1 = arith.constant 1 : index
    %c0_12 = arith.constant 0 : index
    %8 = vector.load %arg7[%c1, %c0_12] : memref<384x4xbf16, #tpu.memory_space<vmem>>, vector<192x4xbf16>
    %c0_13 = arith.constant 0 : index
    %c4 = arith.constant 4 : index
    %9 = vector.load %arg8[%c0_13, %c4] : memref<192x36xbf16, #tpu.memory_space<vmem>>, vector<192x4xbf16>
    tpu.vector_store %arg8[%c0_13, %c4], %8 {strides = array<i32>} : memref<192x36xbf16, #tpu.memory_space<vmem>>, vector<192x4xbf16>,
    %c2 = arith.constant 2 : index
    %c0_14 = arith.constant 0 : index
    %10 = vector.load %arg7[%c2, %c0_14] : memref<384x4xbf16, #tpu.memory_space<vmem>>, vector<192x4xbf16>
    %c0_15 = arith.constant 0 : index
    %c8 = arith.constant 8 : index
    %11 = vector.load %arg8[%c0_15, %c8] : memref<192x36xbf16, #tpu.memory_space<vmem>>, vector<192x4xbf16>
    tpu.vector_store %arg8[%c0_15, %c8], %10 {strides = array<i32>} : memref<192x36xbf16, #tpu.memory_space<vmem>>, vector<192x4xbf16>,
    %c24 = arith.constant 24 : index
    %c0_16 = arith.constant 0 : index
    %12 = vector.load %arg7[%c24, %c0_16] : memref<384x4xbf16, #tpu.memory_space<vmem>>, vector<192x4xbf16>
    %c0_17 = arith.constant 0 : index
    %c12 = arith.constant 12 : index
    %13 = vector.load %arg8[%c0_17, %c12] : memref<192x36xbf16, #tpu.memory_space<vmem>>, vector<192x4xbf16>
    tpu.vector_store %arg8[%c0_17, %c12], %12 {strides = array<i32>} : memref<192x36xbf16, #tpu.memory_space<vmem>>, vector<192x4xbf16>,
    %c25 = arith.constant 25 : index
    %c0_18 = arith.constant 0 : index
    %14 = vector.load %arg7[%c25, %c0_18] : memref<384x4xbf16, #tpu.memory_space<vmem>>, vector<192x4xbf16>
    %c0_19 = arith.constant 0 : index
    %c16 = arith.constant 16 : index
    %15 = vector.load %arg8[%c0_19, %c16] : memref<192x36xbf16, #tpu.memory_space<vmem>>, vector<192x4xbf16>
    tpu.vector_store %arg8[%c0_19, %c16], %14 {strides = array<i32>} : memref<192x36xbf16, #tpu.memory_space<vmem>>, vector<192x4xbf16>,
    %c26 = arith.constant 26 : index
    %c0_20 = arith.constant 0 : index
    %16 = vector.load %arg7[%c26, %c0_20] : memref<384x4xbf16, #tpu.memory_space<vmem>>, vector<192x4xbf16>
    %c0_21 = arith.constant 0 : index
    %c20 = arith.constant 20 : index
    %17 = vector.load %arg8[%c0_21, %c20] : memref<192x36xbf16, #tpu.memory_space<vmem>>, vector<192x4xbf16>
    tpu.vector_store %arg8[%c0_21, %c20], %16 {strides = array<i32>} : memref<192x36xbf16, #tpu.memory_space<vmem>>, vector<192x4xbf16>,
    %c48 = arith.constant 48 : index
    %c0_22 = arith.constant 0 : index
    %18 = vector.load %arg7[%c48, %c0_22] : memref<384x4xbf16, #tpu.memory_space<vmem>>, vector<192x4xbf16>
    %c0_23 = arith.constant 0 : index
    %c24_24 = arith.constant 24 : index
    %19 = vector.load %arg8[%c0_23, %c24_24] : memref<192x36xbf16, #tpu.memory_space<vmem>>, vector<192x4xbf16>
    tpu.vector_store %arg8[%c0_23, %c24_24], %18 {strides = array<i32>} : memref<192x36xbf16, #tpu.memory_space<vmem>>, vector<192x4xbf16>,
    %c49 = arith.constant 49 : index
    %c0_25 = arith.constant 0 : index
    %20 = vector.load %arg7[%c49, %c0_25] : memref<384x4xbf16, #tpu.memory_space<vmem>>, vector<192x4xbf16>
    %c0_26 = arith.constant 0 : index
    %c28 = arith.constant 28 : index
    %21 = vector.load %arg8[%c0_26, %c28] : memref<192x36xbf16, #tpu.memory_space<vmem>>, vector<192x4xbf16>
    tpu.vector_store %arg8[%c0_26, %c28], %20 {strides = array<i32>} : memref<192x36xbf16, #tpu.memory_space<vmem>>, vector<192x4xbf16>,
    %c50 = arith.constant 50 : index
    %c0_27 = arith.constant 0 : index
    %22 = vector.load %arg7[%c50, %c0_27] : memref<384x4xbf16, #tpu.memory_space<vmem>>, vector<192x4xbf16>
    %c0_28 = arith.constant 0 : index
    %c32 = arith.constant 32 : index
    %23 = vector.load %arg8[%c0_28, %c32] : memref<192x36xbf16, #tpu.memory_space<vmem>>, vector<192x4xbf16>
    tpu.vector_store %arg8[%c0_28, %c32], %22 {strides = array<i32>} : memref<192x36xbf16, #tpu.memory_space<vmem>>, vector<192x4xbf16>,
    %c0_29 = arith.constant 0 : index
    %c0_30 = arith.constant 0 : index
    %24 = vector.load %arg8[%c0_29, %c0_30] : memref<192x36xbf16, #tpu.memory_space<vmem>>, vector<192x36xbf16>
    %c0_31 = arith.constant 0 : index
    %c0_32 = arith.constant 0 : index
    %25 = vector.load %arg4[%c0_31, %c0_32] : memref<36x128xbf16, #tpu.memory_space<vmem>>, vector<36x128xbf16>
    %cst = arith.constant dense<0.000000e+00> : vector<192x128xf32>
    %26 = tpu.matmul %24, %25, %cst {dimension_numbers = #tpu.dot_dimension_numbers<[1], [0], [0], [1], [0, 0, 1, 1], [], []>} : vector<192x36xbf16>, vector<36x128xbf16>, vector<192x128xf32> -> vector<192x128xf32>
    %c0_33 = arith.constant 0 : index
    %c0_34 = arith.constant 0 : index
    %27 = vector.load %arg5[%c0_33, %c0_34] : memref<1x128xf32, #tpu.memory_space<vmem>>, vector<1x128xf32>
    %28 = vector.broadcast %27 : vector<1x128xf32> to vector<192x128xf32>
    %29 = arith.addf %26, %28 : vector<192x128xf32>
    %30 = arith.negf %29 : vector<192x128xf32>
    %31 = math.exp %30 : vector<192x128xf32>
    %cst_35 = arith.constant 1.000000e+00 : f32
    %32 = vector.broadcast %cst_35 : f32 to vector<192x128xf32>
    %33 = arith.addf %32, %31 : vector<192x128xf32>
    %34 = arith.divf %32, %33 : vector<192x128xf32>
    %35 = arith.mulf %29, %34 : vector<192x128xf32>
    %36 = arith.truncf %35 : vector<192x128xf32> to vector<192x128xbf16>
    %c0_36 = arith.constant 0 : index
    %c0_37 = arith.constant 0 : index
    %c0_38 = arith.constant 0 : index
    %37 = vector.load %arg6[%c0_36, %c0_37, %c0_38] : memref<1x192x128xbf16, #tpu.memory_space<vmem>>, vector<1x192x128xbf16>
    %38 = vector.shape_cast %37 : vector<1x192x128xbf16> to vector<192x128xbf16>
    %39 = vector.shape_cast %36 : vector<192x128xbf16> to vector<1x192x128xbf16>
    tpu.vector_store %arg6[%c0_36, %c0_37, %c0_38], %39 {strides = array<i32>} : memref<1x192x128xbf16, #tpu.memory_space<vmem>>, vector<1x192x128xbf16>,
    return
  }
  func.func @transform_0(%arg0: i32, %arg1: i32) -> (i32, i32, i32) {
    %c0_i32 = arith.constant 0 : i32
    %c0_i32_0 = arith.constant 0 : i32
    return %arg0, %arg1, %c0_i32 : i32, i32, i32
  }
  func.func @transform_1(%arg0: i32, %arg1: i32) -> (i32, i32, i32) {
    %c1_i32 = arith.constant 1 : i32
    %0 = arith.addi %arg1, %c1_i32 : i32
    %c0_i32 = arith.constant 0 : i32
    %c0_i32_0 = arith.constant 0 : i32
    return %arg0, %0, %c0_i32 : i32, i32, i32
  }
  func.func @transform_2(%arg0: i32, %arg1: i32) -> (i32, i32) {
    %c0_i32 = arith.constant 0 : i32
    %c0_i32_0 = arith.constant 0 : i32
    %c0_i32_1 = arith.constant 0 : i32
    return %c0_i32, %c0_i32_0 : i32, i32
  }
  func.func @transform_3(%arg0: i32, %arg1: i32) -> (i32, i32) {
    %c0_i32 = arith.constant 0 : i32
    %c0_i32_0 = arith.constant 0 : i32
    %c0_i32_1 = arith.constant 0 : i32
    return %c0_i32, %c0_i32_0 : i32, i32
  }
  func.func @transform_4(%arg0: i32, %arg1: i32) -> (i32, i32, i32) {
    %c0_i32 = arith.constant 0 : i32
    %c0_i32_0 = arith.constant 0 : i32
    return %arg0, %arg1, %c0_i32 : i32, i32, i32
  }
}

</mosaic_0001>

<llo_original>
// kernel: conv_forward.1
$region0: #{conv_forward.1}
  #allocation0 [shape = 'u32[]', space=smem, size = 0x4, offset = 0x4, fixed_abs, tag = 'smem constant byte address 0x4 - core index']
  #allocation1 [shape = 'u32[144,128]{1,0:T(1,128)}', space=vmem, size = 0x12000, scoped, tag = 'internal scratch']
  #allocation2 [shape = 'bf16[384,4]{1,0:T(16,128)(2,1)}', space=vmem, size = 0x18000, scoped, tag = 'scratch operand']
  #allocation3 [shape = 'bf16[192,36]{1,0:T(16,128)(2,1)}', space=vmem, size = 0xc000, scoped, tag = 'scratch operand']
  %s0 = inlined_call_operand.vmem [shape: bf16[2,576,4], index: 0, kind: input, shape index: {}, may-alias: {0,1}]
  %s1 = inlined_call_operand.vmem [shape: bf16[2,576,4], index: 1, kind: input, shape index: {}, may-alias: {0,1}]
  %s2 = inlined_call_operand.vmem [shape: bf16[36,128], index: 2, kind: input, shape index: {}]
  %s3 = inlined_call_operand.vmem [shape: f32[1,128], index: 3, kind: input, shape index: {}]
  %s4 = inlined_call_operand.vmem [shape: bf16[2,384,128], index: 4, kind: output, shape index: {}]
  %s5 = sld [smem:[#allocation0]]
  $region49: #{conv_forward.1} parent=0
    _
  %s7 = ssub.s32 1, %s5
  %s8 = scalar_select 0, %s7, %s5
  loop: start=0, step=1, limit=6
  $region2: #{conv_forward.1} parent=0 // loop_pre_header
    _
  $region3: #{conv_forward.1} parent=0 // loop_header
    %s10 = sphi 0, %s14
    %p11 = scmp.ge.s32.totalorder %s10, 6
    %s17 = sphi 0, %s29
    %s18 = sphi 0, %s25
    %s19 = sphi 0, %s17
    %s20 = sphi 0, %s18
    %s21 = sphi 0, %s19
    %s22 = sphi 0, %s20
    %s34 = sphi 0, %s36
    %s37 = sphi 0, %s34
    %s38 = sphi 0, %s37
    %s54 = sphi 0, %s38
    %s64 = sphi 0, %s66
    %s67 = sphi 0, %s64
    %s68 = sphi 0, %s67
    %s84 = sphi 0, %s68
    %s88 = sphi 0, %s88
    %s90 = sphi 0, %s88
    %s91 = sphi 0, %s90
    %s105 = sphi 0, %s91
    %s109 = sphi 0, %s109
    %s111 = sphi 0, %s109
    %s112 = sphi 0, %s111
    %s126 = sphi 0, %s112
    %s134 = sphi 0, %s136
    %s137 = sphi 0, %s134
    %s138 = sphi 0, %s137
    %s154 = sphi 0, %s138
  $region4: #{conv_forward.1} parent=0 // loop_header_branch
    %13 = sbr.rel (%p11) target = $region8
  $region5: #{conv_forward.1} parent=0 // loop_body
    %s15 = ssub.s32 %s10, 1
    %s16 = ssub.s32 %s10, 2
    %s23 = sadd.s32 1, %s18
    %p24 = scmp.ge.s32.totalorder %s23, 2
    %s25 = scalar_select %p24, 0, %s23
    %s26 = sadd.s32 1, %s17
    %s27 = scalar_select %p24, %s26, %s17
    %p28 = scmp.ge.s32.totalorder %s27, 2
    %s29 = scalar_select %p28, 0, %s27
    %s30 = ssub.s32 %s17, %s29
    %s31 = ssub.s32 %s18, %s25
    %s32 = sor.u32 %s30, %s31
    %p33 = scmp.eq.s32.totalorder %s32, 0
    %s35 = sadd.s32 %s34, 1
    %s36 = scalar_select %p33, %s34, %s35
    %p39 = pneg %p33
    %p40 = scmp.eq.s32.totalorder %s10, 3
    %p41 = por %p39, %p40
    %p42 = scmp.ne.s32.totalorder %s34, %s37
    %p43 = scmp.eq.s32.totalorder %s10, 0
    %p44 = por %p42, %p43
    %p45 = scmp.ne.s32.totalorder %s34, %s37
    %p46 = scmp.eq.s32.totalorder %s15, 3
    %p47 = por %p45, %p46
    %p48 = scmp.ne.s32.totalorder %s37, %s38
    %p49 = scmp.eq.s32.totalorder %s15, 0
    %p50 = por %p48, %p49
    %p51 = scmp.ne.s32.totalorder %s37, %s38
    %p52 = scmp.eq.s32.totalorder %s16, 3
    %p53 = por %p51, %p52
    %p55 = scmp.ne.s32.totalorder %s38, %s54
    %p56 = scmp.eq.s32.totalorder %s16, 0
    %p57 = por %p55, %p56
    %s58 = sadd.s32 %s18, 1
    %s59 = sadd.s32 %s25, 1
    %s60 = ssub.s32 %s17, %s29
    %s61 = ssub.s32 %s58, %s59
    %s62 = sor.u32 %s60, %s61
    %p63 = scmp.eq.s32.totalorder %s62, 0
    %s65 = sadd.s32 %s64, 1
    %s66 = scalar_select %p63, %s64, %s65
    %p69 = pneg %p63
    %p70 = scmp.eq.s32.totalorder %s10, 3
    %p71 = por %p69, %p70
    %p72 = scmp.ne.s32.totalorder %s64, %s67
    %p73 = scmp.eq.s32.totalorder %s10, 0
    %p74 = por %p72, %p73
    %p75 = scmp.ne.s32.totalorder %s64, %s67
    %p76 = scmp.eq.s32.totalorder %s15, 3
    %p77 = por %p75, %p76
    %p78 = scmp.ne.s32.totalorder %s67, %s68
    %p79 = scmp.eq.s32.totalorder %s15, 0
    %p80 = por %p78, %p79
    %p81 = scmp.ne.s32.totalorder %s67, %s68
    %p82 = scmp.eq.s32.totalorder %s16, 3
    %p83 = por %p81, %p82
    %p85 = scmp.ne.s32.totalorder %s68, %s84
    %p86 = scmp.eq.s32.totalorder %s16, 0
    %p87 = por %p85, %p86
    %s89 = sadd.s32 %s88, 1
    %p92 = scmp.eq.s32.totalorder %s10, 3
    %p93 = scmp.ne.s32.totalorder %s88, %s90
    %p94 = scmp.eq.s32.totalorder %s10, 0
    %p95 = por %p93, %p94
    %p96 = scmp.ne.s32.totalorder %s88, %s90
    %p97 = scmp.eq.s32.totalorder %s15, 3
    %p98 = por %p96, %p97
    %p99 = scmp.ne.s32.totalorder %s90, %s91
    %p100 = scmp.eq.s32.totalorder %s15, 0
    %p101 = por %p99, %p100
    %p102 = scmp.ne.s32.totalorder %s90, %s91
    %p103 = scmp.eq.s32.totalorder %s16, 3
    %p104 = por %p102, %p103
    %p106 = scmp.ne.s32.totalorder %s91, %s105
    %p107 = scmp.eq.s32.totalorder %s16, 0
    %p108 = por %p106, %p107
    %s110 = sadd.s32 %s109, 1
    %p113 = scmp.eq.s32.totalorder %s10, 3
    %p114 = scmp.ne.s32.totalorder %s109, %s111
    %p115 = scmp.eq.s32.totalorder %s10, 0
    %p116 = por %p114, %p115
    %p117 = scmp.ne.s32.totalorder %s109, %s111
    %p118 = scmp.eq.s32.totalorder %s15, 3
    %p119 = por %p117, %p118
    %p120 = scmp.ne.s32.totalorder %s111, %s112
    %p121 = scmp.eq.s32.totalorder %s15, 0
    %p122 = por %p120, %p121
    %p123 = scmp.ne.s32.totalorder %s111, %s112
    %p124 = scmp.eq.s32.totalorder %s16, 3
    %p125 = por %p123, %p124
    %p127 = scmp.ne.s32.totalorder %s112, %s126
    %p128 = scmp.eq.s32.totalorder %s16, 0
    %p129 = por %p127, %p128
    %s130 = ssub.s32 %s17, %s29
    %s131 = ssub.s32 %s18, %s25
    %s132 = sor.u32 %s130, %s131
    %p133 = scmp.eq.s32.totalorder %s132, 0
    %s135 = sadd.s32 %s134, 1
    %s136 = scalar_select %p133, %s134, %s135
    %p139 = pneg %p133
    %p140 = scmp.eq.s32.totalorder %s10, 3
    %p141 = por %p139, %p140
    %p142 = scmp.ne.s32.totalorder %s134, %s137
    %p143 = scmp.eq.s32.totalorder %s10, 0
    %p144 = por %p142, %p143
    %p145 = scmp.ne.s32.totalorder %s134, %s137
    %p146 = scmp.eq.s32.totalorder %s15, 3
    %p147 = por %p145, %p146
    %p148 = scmp.ne.s32.totalorder %s137, %s138
    %p149 = scmp.eq.s32.totalorder %s15, 0
    %p150 = por %p148, %p149
    %p151 = scmp.ne.s32.totalorder %s137, %s138
    %p152 = scmp.eq.s32.totalorder %s16, 3
    %p153 = por %p151, %p152
    %p155 = scmp.ne.s32.totalorder %s138, %s154
    %p156 = scmp.eq.s32.totalorder %s16, 0
    %p157 = por %p155, %p156
    %p158 = scmp.le.s32.totalorder 1, %s10
    %p159 = scmp.lt.s32.totalorder %s10, 5
    %p160 = pnand %p158, %p159
    %p161 = pneg %p160
    // Predicated region
    $region9: #{conv_forward.1} parent=5 // pred_check
      _
    $region10: #{conv_forward.1} parent=5 // pred_check_branch
      %163 = sbr.rel (%p160) target = $region12
    $region11: #{conv_forward.1} parent=5 // pred_region
      %s164 = ssub.s32 %s10, 1
      // Predicated region
      $region13: #{conv_forward.1} parent=11 // pred_check
        %p165 = pneg %p101
      $region14: #{conv_forward.1} parent=11 // pred_check_branch
        %167 = sbr.rel (%p165) target = $region16
      $region15: #{conv_forward.1} parent=11 // pred_region
        _
      $region16: #{conv_forward.1} parent=11 // pred_fallthru
        _
      // Predicated region
      $region17: #{conv_forward.1} parent=11 // pred_check
        %p168 = pneg %p122
      $region18: #{conv_forward.1} parent=11 // pred_check_branch
        %170 = sbr.rel (%p168) target = $region20
      $region19: #{conv_forward.1} parent=11 // pred_region
        _
      $region20: #{conv_forward.1} parent=11 // pred_fallthru
        _
    $region12: #{conv_forward.1} parent=5 // pred_fallthru
      _
    %p171 = scmp.lt.s32.totalorder %s10, 4
    // Predicated region
    $region21: #{conv_forward.1} parent=5 // pred_check
      %p172 = pneg %p171
    $region22: #{conv_forward.1} parent=5 // pred_check_branch
      %174 = sbr.rel (%p172) target = $region24
    $region23: #{conv_forward.1} parent=5 // pred_region
      // Predicated region
      $region25: #{conv_forward.1} parent=23 // pred_check
        %p175 = pneg %p44
      $region26: #{conv_forward.1} parent=23 // pred_check_branch
        %177 = sbr.rel (%p175) target = $region28
      $region27: #{conv_forward.1} parent=23 // pred_region
        %s178 = smul.u32 24, %s18
        %p179 = scmp.lt.s32.totalorder %s17, 1
        %s180 = scalar_select %p179, %s17, 1
        %p181 = scmp.lt.s32.totalorder %s178, 71
        %s182 = scalar_select %p181, %s178, 71
        %s183 = smul.addr %s180, 72
        %s184 = sadd.s32 %s182, %s183
        %s185 = smul.addr %s184, 4
        %s186 = scalar_lea.vmem %s0, %s185
        %s187 = smul.u32 24, %s18
      $region28: #{conv_forward.1} parent=23 // pred_fallthru
        _
      // Predicated region
      $region29: #{conv_forward.1} parent=23 // pred_check
        %p188 = pneg %p74
      $region30: #{conv_forward.1} parent=23 // pred_check_branch
        %190 = sbr.rel (%p188) target = $region32
      $region31: #{conv_forward.1} parent=23 // pred_region
        %s191 = sadd.s32 %s18, 1
        %s192 = smul.u32 24, %s191
        %p193 = scmp.lt.s32.totalorder %s17, 1
        %s194 = scalar_select %p193, %s17, 1
        %p195 = scmp.lt.s32.totalorder %s192, 71
        %s196 = scalar_select %p195, %s192, 71
        %s197 = smul.addr %s194, 72
        %s198 = sadd.s32 %s196, %s197
        %s199 = smul.addr %s198, 4
        %s200 = scalar_lea.vmem %s1, %s199
        %s201 = sadd.s32 %s18, 1
        %s202 = smul.u32 24, %s201
      $region32: #{conv_forward.1} parent=23 // pred_fallthru
        _
    $region24: #{conv_forward.1} parent=5 // pred_fallthru
      _
    %p203 = scmp.le.s32.totalorder 1, %s10
    %p204 = scmp.lt.s32.totalorder %s10, 5
    %p205 = pnand %p203, %p204
    %p206 = pneg %p205
    // Predicated region
    $region33: #{conv_forward.1} parent=5 // pred_check
      _
    $region34: #{conv_forward.1} parent=5 // pred_check_branch
      %208 = sbr.rel (%p205) target = $region36
    $region35: #{conv_forward.1} parent=5 // pred_region
      %s209 = ssub.s32 %s10, 1
      %s210 = smul.u32 24, %s20
      %p211 = scmp.lt.s32.totalorder %s19, 1
      %s212 = scalar_select %p211, %s19, 1
      %p213 = scmp.lt.s32.totalorder %s210, 71
      %s214 = scalar_select %p213, %s210, 71
      %s215 = smul.addr %s212, 72
      %s216 = sadd.s32 %s214, %s215
      %s217 = smul.addr %s216, 4
      %s218 = scalar_lea.vmem %s0, %s217
      %p219 = pneg %p50
      %p220 = pneg %p47
      %s221 = sadd.s32 %s20, 1
      %s222 = smul.u32 24, %s221
      %p223 = scmp.lt.s32.totalorder %s19, 1
      %s224 = scalar_select %p223, %s19, 1
      %p225 = scmp.lt.s32.totalorder %s222, 71
      %s226 = scalar_select %p225, %s222, 71
      %s227 = smul.addr %s224, 72
      %s228 = sadd.s32 %s226, %s227
      %s229 = smul.addr %s228, 4
      %s230 = scalar_lea.vmem %s1, %s229
      %p231 = pneg %p80
      %p232 = pneg %p77
      %p233 = pneg %p101
      %p234 = pneg %p98
      %p235 = pneg %p122
      %p236 = pneg %p119
      %p237 = pneg %p150
      %p238 = pneg %p147
      %s239 = smul.u32 24, %s20
      %p240 = scmp.lt.s32.totalorder %s19, 1
      %s241 = scalar_select %p240, %s19, 1
      %p242 = scmp.lt.s32.totalorder %s239, 47
      %s243 = scalar_select %p242, %s239, 47
      %s244 = smul.addr %s241, 48
      %s245 = sadd.s32 %s243, %s244
      %s246 = smul.addr %s245, 4
      %s247 = scalar_lea.vmem %s4, %s246
      %s248 = smul.u32 24, %s20
      %p249 = scmp.lt.s32.totalorder %s19, 1
      %s250 = scalar_select %p249, %s19, 1
      %p251 = scmp.lt.s32.totalorder %s248, 71
      %s252 = scalar_select %p251, %s248, 71
      %s253 = smul.addr %s250, 72
      %s254 = sadd.s32 %s252, %s253
      %s255 = smul.addr %s254, 4
      %s256 = scalar_lea.vmem %s0, %s255
      %s257 = smul.u32 24, %s20
      %s258 = sadd.s32 %s20, 1
      %s259 = smul.u32 24, %s258
      %p260 = scmp.lt.s32.totalorder %s19, 1
      %s261 = scalar_select %p260, %s19, 1
      %p262 = scmp.lt.s32.totalorder %s259, 71
      %s263 = scalar_select %p262, %s259, 71
      %s264 = smul.addr %s261, 72
      %s265 = sadd.s32 %s263, %s264
      %s266 = smul.addr %s265, 4
      %s267 = scalar_lea.vmem %s1, %s266
      %s268 = sadd.s32 %s20, 1
      %s269 = smul.u32 24, %s268
      %s270 = smul.u32 24, %s20
      %p271 = scmp.lt.s32.totalorder %s19, 1
      %s272 = scalar_select %p271, %s19, 1
      %p273 = scmp.lt.s32.totalorder %s270, 47
      %s274 = scalar_select %p273, %s270, 47
      %s275 = smul.addr %s272, 48
      %s276 = sadd.s32 %s274, %s275
      %s277 = smul.addr %s276, 4
      %s278 = scalar_lea.vmem %s4, %s277
      %s279 = smul.u32 24, %s20
      %v281 = vld [vmem:[%s256] sm:$0xf]
      %v282 = vld [vmem:[%s256 + $0x4] sm:$0xf]
      %v283 = vld [vmem:[%s256 + $0x8] sm:$0xf]
      %v284 = vld [vmem:[%s256 + $0xc] sm:$0xf]
      %v285 = vld [vmem:[%s256 + $0x10] sm:$0xf]
      %v286 = vld [vmem:[%s256 + $0x14] sm:$0xf]
      %v287 = vld [vmem:[%s256 + $0x18] sm:$0xf]
      %v288 = vld [vmem:[%s256 + $0x1c] sm:$0xf]
      %v289 = vld [vmem:[%s256 + $0x20] sm:$0xf]
      %v290 = vld [vmem:[%s256 + $0x24] sm:$0xf]
      %v291 = vld [vmem:[%s256 + $0x28] sm:$0xf]
      %v292 = vld [vmem:[%s256 + $0x2c] sm:$0xf]
      %v293 = vld [vmem:[%s256 + $0x30] sm:$0xf]
      %v294 = vld [vmem:[%s256 + $0x34] sm:$0xf]
      %v295 = vld [vmem:[%s256 + $0x38] sm:$0xf]
      %v296 = vld [vmem:[%s256 + $0x3c] sm:$0xf]
      %v297 = vld [vmem:[%s256 + $0x40] sm:$0xf]
      %v298 = vld [vmem:[%s256 + $0x44] sm:$0xf]
      %v299 = vld [vmem:[%s256 + $0x48] sm:$0xf]
      %v300 = vld [vmem:[%s256 + $0x4c] sm:$0xf]
      %v301 = vld [vmem:[%s256 + $0x50] sm:$0xf]
      %v302 = vld [vmem:[%s256 + $0x54] sm:$0xf]
      %v303 = vld [vmem:[%s256 + $0x58] sm:$0xf]
      %v304 = vld [vmem:[%s256 + $0x5c] sm:$0xf]
      %v329 = vunpack.c.l.b16 %v281
      %v330 = vunpack.c.l.b16 %v282
      %v331 = vunpack.c.l.b16 %v283
      %v332 = vunpack.c.l.b16 %v284
      %v333 = vunpack.c.l.b16 %v285
      %v334 = vunpack.c.l.b16 %v286
      %v335 = vunpack.c.l.b16 %v287
      %v336 = vunpack.c.l.b16 %v288
      %v337 = vunpack.c.l.b16 %v289
      %v338 = vunpack.c.l.b16 %v290
      %v339 = vunpack.c.l.b16 %v291
      %v340 = vunpack.c.l.b16 %v292
      %v341 = vunpack.c.l.b16 %v293
      %v342 = vunpack.c.l.b16 %v294
      %v343 = vunpack.c.l.b16 %v295
      %v344 = vunpack.c.l.b16 %v296
      %v345 = vunpack.c.l.b16 %v297
      %v346 = vunpack.c.l.b16 %v298
      %v347 = vunpack.c.l.b16 %v299
      %v348 = vunpack.c.l.b16 %v300
      %v349 = vunpack.c.l.b16 %v301
      %v350 = vunpack.c.l.b16 %v302
      %v351 = vunpack.c.l.b16 %v303
      %v352 = vunpack.c.l.b16 %v304
      %v353 = vpack.c.b16 %v330, %v329
      %v354 = vpack.c.b16 %v332, %v331
      %v355 = vpack.c.b16 %v334, %v333
      %v356 = vpack.c.b16 %v336, %v335
      %v357 = vpack.c.b16 %v338, %v337
      %v358 = vpack.c.b16 %v340, %v339
      %v359 = vpack.c.b16 %v342, %v341
      %v360 = vpack.c.b16 %v344, %v343
      %v361 = vpack.c.b16 %v346, %v345
      %v362 = vpack.c.b16 %v348, %v347
      %v363 = vpack.c.b16 %v350, %v349
      %v364 = vpack.c.b16 %v352, %v351
      %vm377 = vcmask 31744
      %378 = vst.msk [vmem:[#allocation2] sm:$0xff] %vm377, %v353
      %379 = vst.msk [vmem:[#allocation2 + $0x8] sm:$0xff] %vm377, %v354
      %380 = vst.msk [vmem:[#allocation2 + $0x10] sm:$0xff] %vm377, %v355
      %381 = vst.msk [vmem:[#allocation2 + $0x18] sm:$0xff] %vm377, %v356
      %382 = vst.msk [vmem:[#allocation2 + $0x20] sm:$0xff] %vm377, %v357
      %383 = vst.msk [vmem:[#allocation2 + $0x28] sm:$0xff] %vm377, %v358
      %384 = vst.msk [vmem:[#allocation2 + $0x30] sm:$0xff] %vm377, %v359
      %385 = vst.msk [vmem:[#allocation2 + $0x38] sm:$0xff] %vm377, %v360
      %386 = vst.msk [vmem:[#allocation2 + $0x40] sm:$0xff] %vm377, %v361
      %387 = vst.msk [vmem:[#allocation2 + $0x48] sm:$0xff] %vm377, %v362
      %388 = vst.msk [vmem:[#allocation2 + $0x50] sm:$0xff] %vm377, %v363
      %389 = vst.msk [vmem:[#allocation2 + $0x58] sm:$0xff] %vm377, %v364
      %v390 = vld [vmem:[%s267] sm:$0xf]
      %v391 = vld [vmem:[%s267 + $0x4] sm:$0xf]
      %v392 = vld [vmem:[%s267 + $0x8] sm:$0xf]
      %v393 = vld [vmem:[%s267 + $0xc] sm:$0xf]
      %v394 = vld [vmem:[%s267 + $0x10] sm:$0xf]
      %v395 = vld [vmem:[%s267 + $0x14] sm:$0xf]
      %v396 = vld [vmem:[%s267 + $0x18] sm:$0xf]
      %v397 = vld [vmem:[%s267 + $0x1c] sm:$0xf]
      %v398 = vld [vmem:[%s267 + $0x20] sm:$0xf]
      %v399 = vld [vmem:[%s267 + $0x24] sm:$0xf]
      %v400 = vld [vmem:[%s267 + $0x28] sm:$0xf]
      %v401 = vld [vmem:[%s267 + $0x2c] sm:$0xf]
      %v402 = vld [vmem:[%s267 + $0x30] sm:$0xf]
      %v403 = vld [vmem:[%s267 + $0x34] sm:$0xf]
      %v404 = vld [vmem:[%s267 + $0x38] sm:$0xf]
      %v405 = vld [vmem:[%s267 + $0x3c] sm:$0xf]
      %v406 = vld [vmem:[%s267 + $0x40] sm:$0xf]
      %v407 = vld [vmem:[%s267 + $0x44] sm:$0xf]
      %v408 = vld [vmem:[%s267 + $0x48] sm:$0xf]
      %v409 = vld [vmem:[%s267 + $0x4c] sm:$0xf]
      %v410 = vld [vmem:[%s267 + $0x50] sm:$0xf]
      %v411 = vld [vmem:[%s267 + $0x54] sm:$0xf]
      %v412 = vld [vmem:[%s267 + $0x58] sm:$0xf]
      %v413 = vld [vmem:[%s267 + $0x5c] sm:$0xf]
      %v438 = vunpack.c.l.b16 %v390
      %v439 = vunpack.c.l.b16 %v391
      %v440 = vunpack.c.l.b16 %v392
      %v441 = vunpack.c.l.b16 %v393
      %v442 = vunpack.c.l.b16 %v394
      %v443 = vunpack.c.l.b16 %v395
      %v444 = vunpack.c.l.b16 %v396
      %v445 = vunpack.c.l.b16 %v397
      %v446 = vunpack.c.l.b16 %v398
      %v447 = vunpack.c.l.b16 %v399
      %v448 = vunpack.c.l.b16 %v400
      %v449 = vunpack.c.l.b16 %v401
      %v450 = vunpack.c.l.b16 %v402
      %v451 = vunpack.c.l.b16 %v403
      %v452 = vunpack.c.l.b16 %v404
      %v453 = vunpack.c.l.b16 %v405
      %v454 = vunpack.c.l.b16 %v406
      %v455 = vunpack.c.l.b16 %v407
      %v456 = vunpack.c.l.b16 %v408
      %v457 = vunpack.c.l.b16 %v409
      %v458 = vunpack.c.l.b16 %v410
      %v459 = vunpack.c.l.b16 %v411
      %v460 = vunpack.c.l.b16 %v412
      %v461 = vunpack.c.l.b16 %v413
      %v462 = vpack.c.b16 %v439, %v438
      %v463 = vpack.c.b16 %v441, %v440
      %v464 = vpack.c.b16 %v443, %v442
      %v465 = vpack.c.b16 %v445, %v444
      %v466 = vpack.c.b16 %v447, %v446
      %v467 = vpack.c.b16 %v449, %v448
      %v468 = vpack.c.b16 %v451, %v450
      %v469 = vpack.c.b16 %v453, %v452
      %v470 = vpack.c.b16 %v455, %v454
      %v471 = vpack.c.b16 %v457, %v456
      %v472 = vpack.c.b16 %v459, %v458
      %v473 = vpack.c.b16 %v461, %v460
      %486 = vst.msk [vmem:[#allocation2 + $0x60] sm:$0xff] %vm377, %v462
      %487 = vst.msk [vmem:[#allocation2 + $0x68] sm:$0xff] %vm377, %v463
      %488 = vst.msk [vmem:[#allocation2 + $0x70] sm:$0xff] %vm377, %v464
      %489 = vst.msk [vmem:[#allocation2 + $0x78] sm:$0xff] %vm377, %v465
      %490 = vst.msk [vmem:[#allocation2 + $0x80] sm:$0xff] %vm377, %v466
      %491 = vst.msk [vmem:[#allocation2 + $0x88] sm:$0xff] %vm377, %v467
      %492 = vst.msk [vmem:[#allocation2 + $0x90] sm:$0xff] %vm377, %v468
      %493 = vst.msk [vmem:[#allocation2 + $0x98] sm:$0xff] %vm377, %v469
      %494 = vst.msk [vmem:[#allocation2 + $0xa0] sm:$0xff] %vm377, %v470
      %495 = vst.msk [vmem:[#allocation2 + $0xa8] sm:$0xff] %vm377, %v471
      %496 = vst.msk [vmem:[#allocation2 + $0xb0] sm:$0xff] %vm377, %v472
      %497 = vst.msk [vmem:[#allocation2 + $0xb8] sm:$0xff] %vm377, %v473
      %v498 = vld [vmem:[#allocation2] sm:$0xff]
      %v499 = vld [vmem:[#allocation2 + $0x8] sm:$0xff]
      %v500 = vld [vmem:[#allocation2 + $0x10] sm:$0xff]
      %v501 = vld [vmem:[#allocation2 + $0x18] sm:$0xff]
      %v502 = vld [vmem:[#allocation2 + $0x20] sm:$0xff]
      %v503 = vld [vmem:[#allocation2 + $0x28] sm:$0xff]
      %v504 = vld [vmem:[#allocation2 + $0x30] sm:$0xff]
      %v505 = vld [vmem:[#allocation2 + $0x38] sm:$0xff]
      %v506 = vld [vmem:[#allocation2 + $0x40] sm:$0xff]
      %v507 = vld [vmem:[#allocation2 + $0x48] sm:$0xff]
      %v508 = vld [vmem:[#allocation2 + $0x50] sm:$0xff]
      %v509 = vld [vmem:[#allocation2 + $0x58] sm:$0xff]
      %510 = vst.msk [vmem:[#allocation3] sm:$0xff] %vm377, %v498
      %511 = vst.msk [vmem:[#allocation3 + $0x8] sm:$0xff] %vm377, %v499
      %512 = vst.msk [vmem:[#allocation3 + $0x10] sm:$0xff] %vm377, %v500
      %513 = vst.msk [vmem:[#allocation3 + $0x18] sm:$0xff] %vm377, %v501
      %514 = vst.msk [vmem:[#allocation3 + $0x20] sm:$0xff] %vm377, %v502
      %515 = vst.msk [vmem:[#allocation3 + $0x28] sm:$0xff] %vm377, %v503
      %516 = vst.msk [vmem:[#allocation3 + $0x30] sm:$0xff] %vm377, %v504
      %517 = vst.msk [vmem:[#allocation3 + $0x38] sm:$0xff] %vm377, %v505
      %518 = vst.msk [vmem:[#allocation3 + $0x40] sm:$0xff] %vm377, %v506
      %519 = vst.msk [vmem:[#allocation3 + $0x48] sm:$0xff] %vm377, %v507
      %520 = vst.msk [vmem:[#allocation3 + $0x50] sm:$0xff] %vm377, %v508
      %521 = vst.msk [vmem:[#allocation3 + $0x58] sm:$0xff] %vm377, %v509
      %v522 = vld [vmem:[#allocation2] sm:$0xff]
      %v523 = vld [vmem:[#allocation2 + $0x8] sm:$0xff]
      %v524 = vld [vmem:[#allocation2 + $0x10] sm:$0xff]
      %v525 = vld [vmem:[#allocation2 + $0x18] sm:$0xff]
      %v526 = vld [vmem:[#allocation2 + $0x20] sm:$0xff]
      %v527 = vld [vmem:[#allocation2 + $0x28] sm:$0xff]
      %v528 = vld [vmem:[#allocation2 + $0x30] sm:$0xff]
      %v529 = vld [vmem:[#allocation2 + $0x38] sm:$0xff]
      %v530 = vld [vmem:[#allocation2 + $0x40] sm:$0xff]
      %v531 = vld [vmem:[#allocation2 + $0x48] sm:$0xff]
      %v532 = vld [vmem:[#allocation2 + $0x50] sm:$0xff]
      %v533 = vld [vmem:[#allocation2 + $0x58] sm:$0xff]
      %v534 = vld [vmem:[#allocation2 + $0x60] sm:$0x1]
      %vm535 = vsmask.f32 7424
      %v537 = vshrl.u32 %v522, 16
      %v539 = vshll.u32 %v522, 16
      %v541 = vrot.slane %v539, 1
      %v542 = vor.u32 %v537, %v541
      %v544 = vshll.u32 %v523, 16
      %v546 = vrot.slane %v544, 1
      %v547 = vsel %vm535, %v542, %v546
      %v548 = vshrl.u32 %v523, 16
      %v550 = vor.u32 %v548, %v546
      %v552 = vshll.u32 %v524, 16
      %v554 = vrot.slane %v552, 1
      %v555 = vsel %vm535, %v550, %v554
      %v556 = vshrl.u32 %v524, 16
      %v558 = vor.u32 %v556, %v554
      %v560 = vshll.u32 %v525, 16
      %v562 = vrot.slane %v560, 1
      %v563 = vsel %vm535, %v558, %v562
      %v564 = vshrl.u32 %v525, 16
      %v566 = vor.u32 %v564, %v562
      %v568 = vshll.u32 %v526, 16
      %v570 = vrot.slane %v568, 1
      %v571 = vsel %vm535, %v566, %v570
      %v572 = vshrl.u32 %v526, 16
      %v574 = vor.u32 %v572, %v570
      %v576 = vshll.u32 %v527, 16
      %v578 = vrot.slane %v576, 1
      %v579 = vsel %vm535, %v574, %v578
      %v580 = vshrl.u32 %v527, 16
      %v582 = vor.u32 %v580, %v578
      %v584 = vshll.u32 %v528, 16
      %v586 = vrot.slane %v584, 1
      %v587 = vsel %vm535, %v582, %v586
      %v588 = vshrl.u32 %v528, 16
      %v590 = vor.u32 %v588, %v586
      %v592 = vshll.u32 %v529, 16
      %v594 = vrot.slane %v592, 1
      %v595 = vsel %vm535, %v590, %v594
      %v596 = vshrl.u32 %v529, 16
      %v598 = vor.u32 %v596, %v594
      %v600 = vshll.u32 %v530, 16
      %v602 = vrot.slane %v600, 1
      %v603 = vsel %vm535, %v598, %v602
      %v604 = vshrl.u32 %v530, 16
      %v606 = vor.u32 %v604, %v602
      %v608 = vshll.u32 %v531, 16
      %v610 = vrot.slane %v608, 1
      %v611 = vsel %vm535, %v606, %v610
      %v612 = vshrl.u32 %v531, 16
      %v614 = vor.u32 %v612, %v610
      %v616 = vshll.u32 %v532, 16
      %v618 = vrot.slane %v616, 1
      %v619 = vsel %vm535, %v614, %v618
      %v620 = vshrl.u32 %v532, 16
      %v622 = vor.u32 %v620, %v618
      %v624 = vshll.u32 %v533, 16
      %v626 = vrot.slane %v624, 1
      %v627 = vsel %vm535, %v622, %v626
      %v628 = vshrl.u32 %v533, 16
      %v630 = vor.u32 %v628, %v626
      %v632 = vshll.u32 %v534, 16
      %v634 = vrot.slane %v632, 1
      %v635 = vsel %vm535, %v630, %v634
      %636 = vrot.lane.b32.xlu0 %v547, 4
      %v637 = vpop.permute.xlu0 %636
      %638 = vrot.lane.b32.xlu0 %v555, 4
      %v639 = vpop.permute.xlu0 %638
      %640 = vrot.lane.b32.xlu0 %v563, 4
      %v641 = vpop.permute.xlu0 %640
      %642 = vrot.lane.b32.xlu0 %v571, 4
      %v643 = vpop.permute.xlu0 %642
      %644 = vrot.lane.b32.xlu0 %v579, 4
      %v645 = vpop.permute.xlu0 %644
      %646 = vrot.lane.b32.xlu0 %v587, 4
      %v647 = vpop.permute.xlu0 %646
      %648 = vrot.lane.b32.xlu0 %v595, 4
      %v649 = vpop.permute.xlu0 %648
      %650 = vrot.lane.b32.xlu0 %v603, 4
      %v651 = vpop.permute.xlu0 %650
      %652 = vrot.lane.b32.xlu0 %v611, 4
      %v653 = vpop.permute.xlu0 %652
      %654 = vrot.lane.b32.xlu0 %v619, 4
      %v655 = vpop.permute.xlu0 %654
      %656 = vrot.lane.b32.xlu0 %v627, 4
      %v657 = vpop.permute.xlu0 %656
      %658 = vrot.lane.b32.xlu0 %v635, 4
      %v659 = vpop.permute.xlu0 %658
      %vm672 = vcmask 64544
      %673 = vst.msk [vmem:[#allocation3] sm:$0xff] %vm672, %v637
      %674 = vst.msk [vmem:[#allocation3 + $0x8] sm:$0xff] %vm672, %v639
      %675 = vst.msk [vmem:[#allocation3 + $0x10] sm:$0xff] %vm672, %v641
      %676 = vst.msk [vmem:[#allocation3 + $0x18] sm:$0xff] %vm672, %v643
      %677 = vst.msk [vmem:[#allocation3 + $0x20] sm:$0xff] %vm672, %v645
      %678 = vst.msk [vmem:[#allocation3 + $0x28] sm:$0xff] %vm672, %v647
      %679 = vst.msk [vmem:[#allocation3 + $0x30] sm:$0xff] %vm672, %v649
      %680 = vst.msk [vmem:[#allocation3 + $0x38] sm:$0xff] %vm672, %v651
      %681 = vst.msk [vmem:[#allocation3 + $0x40] sm:$0xff] %vm672, %v653
      %682 = vst.msk [vmem:[#allocation3 + $0x48] sm:$0xff] %vm672, %v655
      %683 = vst.msk [vmem:[#allocation3 + $0x50] sm:$0xff] %vm672, %v657
      %684 = vst.msk [vmem:[#allocation3 + $0x58] sm:$0xff] %vm672, %v659
      %v685 = vld [vmem:[#allocation2] sm:$0xfe]
      %v686 = vld [vmem:[#allocation2 + $0x8] sm:$0xff]
      %v687 = vld [vmem:[#allocation2 + $0x10] sm:$0xff]
      %v688 = vld [vmem:[#allocation2 + $0x18] sm:$0xff]
      %v689 = vld [vmem:[#allocation2 + $0x20] sm:$0xff]
      %v690 = vld [vmem:[#allocation2 + $0x28] sm:$0xff]
      %v691 = vld [vmem:[#allocation2 + $0x30] sm:$0xff]
      %v692 = vld [vmem:[#allocation2 + $0x38] sm:$0xff]
      %v693 = vld [vmem:[#allocation2 + $0x40] sm:$0xff]
      %v694 = vld [vmem:[#allocation2 + $0x48] sm:$0xff]
      %v695 = vld [vmem:[#allocation2 + $0x50] sm:$0xff]
      %v696 = vld [vmem:[#allocation2 + $0x58] sm:$0xff]
      %v697 = vld [vmem:[#allocation2 + $0x60] sm:$0x1]
      %vm711 = vcmask 1046528
      %v712 = vrot.slane %v685, 1
      %v713 = vrot.slane %v686, 1
      %v714 = vsel %vm711, %v712, %v713
      %v715 = vrot.slane %v687, 1
      %v716 = vsel %vm711, %v713, %v715
      %v717 = vrot.slane %v688, 1
      %v718 = vsel %vm711, %v715, %v717
      %v719 = vrot.slane %v689, 1
      %v720 = vsel %vm711, %v717, %v719
      %v721 = vrot.slane %v690, 1
      %v722 = vsel %vm711, %v719, %v721
      %v723 = vrot.slane %v691, 1
      %v724 = vsel %vm711, %v721, %v723
      %v725 = vrot.slane %v692, 1
      %v726 = vsel %vm711, %v723, %v725
      %v727 = vrot.slane %v693, 1
      %v728 = vsel %vm711, %v725, %v727
      %v729 = vrot.slane %v694, 1
      %v730 = vsel %vm711, %v727, %v729
      %v731 = vrot.slane %v695, 1
      %v732 = vsel %vm711, %v729, %v731
      %v733 = vrot.slane %v696, 1
      %v734 = vsel %vm711, %v731, %v733
      %v735 = vrot.slane %v697, 1
      %v736 = vsel %vm711, %v733, %v735
      %737 = vrot.lane.b32.xlu0 %v714, 8
      %v738 = vpop.permute.xlu0 %737
      %739 = vrot.lane.b32.xlu0 %v716, 8
      %v740 = vpop.permute.xlu0 %739
      %741 = vrot.lane.b32.xlu0 %v718, 8
      %v742 = vpop.permute.xlu0 %741
      %743 = vrot.lane.b32.xlu0 %v720, 8
      %v744 = vpop.permute.xlu0 %743
      %745 = vrot.lane.b32.xlu0 %v722, 8
      %v746 = vpop.permute.xlu0 %745
      %747 = vrot.lane.b32.xlu0 %v724, 8
      %v748 = vpop.permute.xlu0 %747
      %749 = vrot.lane.b32.xlu0 %v726, 8
      %v750 = vpop.permute.xlu0 %749
      %751 = vrot.lane.b32.xlu0 %v728, 8
      %v752 = vpop.permute.xlu0 %751
      %753 = vrot.lane.b32.xlu0 %v730, 8
      %v754 = vpop.permute.xlu0 %753
      %755 = vrot.lane.b32.xlu0 %v732, 8
      %v756 = vpop.permute.xlu0 %755
      %757 = vrot.lane.b32.xlu0 %v734, 8
      %v758 = vpop.permute.xlu0 %757
      %759 = vrot.lane.b32.xlu0 %v736, 8
      %v760 = vpop.permute.xlu0 %759
      %vm773 = vcmask 97344
      %774 = vst.msk [vmem:[#allocation3] sm:$0xff] %vm773, %v738
      %775 = vst.msk [vmem:[#allocation3 + $0x8] sm:$0xff] %vm773, %v740
      %776 = vst.msk [vmem:[#allocation3 + $0x10] sm:$0xff] %vm773, %v742
      %777 = vst.msk [vmem:[#allocation3 + $0x18] sm:$0xff] %vm773, %v744
      %778 = vst.msk [vmem:[#allocation3 + $0x20] sm:$0xff] %vm773, %v746
      %779 = vst.msk [vmem:[#allocation3 + $0x28] sm:$0xff] %vm773, %v748
      %780 = vst.msk [vmem:[#allocation3 + $0x30] sm:$0xff] %vm773, %v750
      %781 = vst.msk [vmem:[#allocation3 + $0x38] sm:$0xff] %vm773, %v752
      %782 = vst.msk [vmem:[#allocation3 + $0x40] sm:$0xff] %vm773, %v754
      %783 = vst.msk [vmem:[#allocation3 + $0x48] sm:$0xff] %vm773, %v756
      %784 = vst.msk [vmem:[#allocation3 + $0x50] sm:$0xff] %vm773, %v758
      %785 = vst.msk [vmem:[#allocation3 + $0x58] sm:$0xff] %vm773, %v760
      %v786 = vld [vmem:[#allocation2 + $0x8] sm:$0xf0]
      %v787 = vld [vmem:[#allocation2 + $0x10] sm:$0xff]
      %v788 = vld [vmem:[#allocation2 + $0x18] sm:$0xff]
      %v789 = vld [vmem:[#allocation2 + $0x20] sm:$0xff]
      %v790 = vld [vmem:[#allocation2 + $0x28] sm:$0xff]
      %v791 = vld [vmem:[#allocation2 + $0x30] sm:$0xff]
      %v792 = vld [vmem:[#allocation2 + $0x38] sm:$0xff]
      %v793 = vld [vmem:[#allocation2 + $0x40] sm:$0xff]
      %v794 = vld [vmem:[#allocation2 + $0x48] sm:$0xff]
      %v795 = vld [vmem:[#allocation2 + $0x50] sm:$0xff]
      %v796 = vld [vmem:[#allocation2 + $0x58] sm:$0xff]
      %v797 = vld [vmem:[#allocation2 + $0x60] sm:$0xff]
      %v798 = vld [vmem:[#allocation2 + $0x68] sm:$0xf]
      %vm812 = vcmask 1043456
      %v813 = vrot.slane %v786, 4
      %v814 = vrot.slane %v787, 4
      %v815 = vsel %vm812, %v813, %v814
      %v816 = vrot.slane %v788, 4
      %v817 = vsel %vm812, %v814, %v816
      %v818 = vrot.slane %v789, 4
      %v819 = vsel %vm812, %v816, %v818
      %v820 = vrot.slane %v790, 4
      %v821 = vsel %vm812, %v818, %v820
      %v822 = vrot.slane %v791, 4
      %v823 = vsel %vm812, %v820, %v822
      %v824 = vrot.slane %v792, 4
      %v825 = vsel %vm812, %v822, %v824
      %v826 = vrot.slane %v793, 4
      %v827 = vsel %vm812, %v824, %v826
      %v828 = vrot.slane %v794, 4
      %v829 = vsel %vm812, %v826, %v828
      %v830 = vrot.slane %v795, 4
      %v831 = vsel %vm812, %v828, %v830
      %v832 = vrot.slane %v796, 4
      %v833 = vsel %vm812, %v830, %v832
      %v834 = vrot.slane %v797, 4
      %v835 = vsel %vm812, %v832, %v834
      %v836 = vrot.slane %v798, 4
      %v837 = vsel %vm812, %v834, %v836
      %838 = vrot.lane.b32.xlu0 %v815, 12
      %v839 = vpop.permute.xlu0 %838
      %840 = vrot.lane.b32.xlu0 %v817, 12
      %v841 = vpop.permute.xlu0 %840
      %842 = vrot.lane.b32.xlu0 %v819, 12
      %v843 = vpop.permute.xlu0 %842
      %844 = vrot.lane.b32.xlu0 %v821, 12
      %v845 = vpop.permute.xlu0 %844
      %846 = vrot.lane.b32.xlu0 %v823, 12
      %v847 = vpop.permute.xlu0 %846
      %848 = vrot.lane.b32.xlu0 %v825, 12
      %v849 = vpop.permute.xlu0 %848
      %850 = vrot.lane.b32.xlu0 %v827, 12
      %v851 = vpop.permute.xlu0 %850
      %852 = vrot.lane.b32.xlu0 %v829, 12
      %v853 = vpop.permute.xlu0 %852
      %854 = vrot.lane.b32.xlu0 %v831, 12
      %v855 = vpop.permute.xlu0 %854
      %856 = vrot.lane.b32.xlu0 %v833, 12
      %v857 = vpop.permute.xlu0 %856
      %858 = vrot.lane.b32.xlu0 %v835, 12
      %v859 = vpop.permute.xlu0 %858
      %860 = vrot.lane.b32.xlu0 %v837, 12
      %v861 = vpop.permute.xlu0 %860
      %vm874 = vcmask 130144
      %875 = vst.msk [vmem:[#allocation3] sm:$0xff] %vm874, %v839
      %876 = vst.msk [vmem:[#allocation3 + $0x8] sm:$0xff] %vm874, %v841
      %877 = vst.msk [vmem:[#allocation3 + $0x10] sm:$0xff] %vm874, %v843
      %878 = vst.msk [vmem:[#allocation3 + $0x18] sm:$0xff] %vm874, %v845
      %879 = vst.msk [vmem:[#allocation3 + $0x20] sm:$0xff] %vm874, %v847
      %880 = vst.msk [vmem:[#allocation3 + $0x28] sm:$0xff] %vm874, %v849
      %881 = vst.msk [vmem:[#allocation3 + $0x30] sm:$0xff] %vm874, %v851
      %882 = vst.msk [vmem:[#allocation3 + $0x38] sm:$0xff] %vm874, %v853
      %883 = vst.msk [vmem:[#allocation3 + $0x40] sm:$0xff] %vm874, %v855
      %884 = vst.msk [vmem:[#allocation3 + $0x48] sm:$0xff] %vm874, %v857
      %885 = vst.msk [vmem:[#allocation3 + $0x50] sm:$0xff] %vm874, %v859
      %886 = vst.msk [vmem:[#allocation3 + $0x58] sm:$0xff] %vm874, %v861
      %v887 = vld [vmem:[#allocation2 + $0x8] sm:$0xf0]
      %v888 = vld [vmem:[#allocation2 + $0x10] sm:$0xff]
      %v889 = vld [vmem:[#allocation2 + $0x18] sm:$0xff]
      %v890 = vld [vmem:[#allocation2 + $0x20] sm:$0xff]
      %v891 = vld [vmem:[#allocation2 + $0x28] sm:$0xff]
      %v892 = vld [vmem:[#allocation2 + $0x30] sm:$0xff]
      %v893 = vld [vmem:[#allocation2 + $0x38] sm:$0xff]
      %v894 = vld [vmem:[#allocation2 + $0x40] sm:$0xff]
      %v895 = vld [vmem:[#allocation2 + $0x48] sm:$0xff]
      %v896 = vld [vmem:[#allocation2 + $0x50] sm:$0xff]
      %v897 = vld [vmem:[#allocation2 + $0x58] sm:$0xff]
      %v898 = vld [vmem:[#allocation2 + $0x60] sm:$0xff]
      %v899 = vld [vmem:[#allocation2 + $0x68] sm:$0x1f]
      %vm900 = vsmask.f32 3328
      %v902 = vshrl.u32 %v887, 16
      %v904 = vrot.slane %v902, 4
      %v905 = vshll.u32 %v887, 16
      %v907 = vrot.slane %v905, 5
      %v908 = vor.u32 %v904, %v907
      %v910 = vshrl.u32 %v888, 16
      %v912 = vrot.slane %v910, 4
      %v913 = vshll.u32 %v888, 16
      %v915 = vrot.slane %v913, 5
      %v916 = vor.u32 %v912, %v915
      %v917 = vsel %vm900, %v908, %v916
      %v919 = vshrl.u32 %v889, 16
      %v921 = vrot.slane %v919, 4
      %v922 = vshll.u32 %v889, 16
      %v924 = vrot.slane %v922, 5
      %v925 = vor.u32 %v921, %v924
      %v926 = vsel %vm900, %v916, %v925
      %v928 = vshrl.u32 %v890, 16
      %v930 = vrot.slane %v928, 4
      %v931 = vshll.u32 %v890, 16
      %v933 = vrot.slane %v931, 5
      %v934 = vor.u32 %v930, %v933
      %v935 = vsel %vm900, %v925, %v934
      %v937 = vshrl.u32 %v891, 16
      %v939 = vrot.slane %v937, 4
      %v940 = vshll.u32 %v891, 16
      %v942 = vrot.slane %v940, 5
      %v943 = vor.u32 %v939, %v942
      %v944 = vsel %vm900, %v934, %v943
      %v946 = vshrl.u32 %v892, 16
      %v948 = vrot.slane %v946, 4
      %v949 = vshll.u32 %v892, 16
      %v951 = vrot.slane %v949, 5
      %v952 = vor.u32 %v948, %v951
      %v953 = vsel %vm900, %v943, %v952
      %v955 = vshrl.u32 %v893, 16
      %v957 = vrot.slane %v955, 4
      %v958 = vshll.u32 %v893, 16
      %v960 = vrot.slane %v958, 5
      %v961 = vor.u32 %v957, %v960
      %v962 = vsel %vm900, %v952, %v961
      %v964 = vshrl.u32 %v894, 16
      %v966 = vrot.slane %v964, 4
      %v967 = vshll.u32 %v894, 16
      %v969 = vrot.slane %v967, 5
      %v970 = vor.u32 %v966, %v969
      %v971 = vsel %vm900, %v961, %v970
      %v973 = vshrl.u32 %v895, 16
      %v975 = vrot.slane %v973, 4
      %v976 = vshll.u32 %v895, 16
      %v978 = vrot.slane %v976, 5
      %v979 = vor.u32 %v975, %v978
      %v980 = vsel %vm900, %v970, %v979
      %v982 = vshrl.u32 %v896, 16
      %v984 = vrot.slane %v982, 4
      %v985 = vshll.u32 %v896, 16
      %v987 = vrot.slane %v985, 5
      %v988 = vor.u32 %v984, %v987
      %v989 = vsel %vm900, %v979, %v988
      %v991 = vshrl.u32 %v897, 16
      %v993 = vrot.slane %v991, 4
      %v994 = vshll.u32 %v897, 16
      %v996 = vrot.slane %v994, 5
      %v997 = vor.u32 %v993, %v996
      %v998 = vsel %vm900, %v988, %v997
      %v1000 = vshrl.u32 %v898, 16
      %v1002 = vrot.slane %v1000, 4
      %v1003 = vshll.u32 %v898, 16
      %v1005 = vrot.slane %v1003, 5
      %v1006 = vor.u32 %v1002, %v1005
      %v1007 = vsel %vm900, %v997, %v1006
      %v1009 = vshrl.u32 %v899, 16
      %v1011 = vrot.slane %v1009, 4
      %v1012 = vshll.u32 %v899, 16
      %v1014 = vrot.slane %v1012, 5
      %v1015 = vor.u32 %v1011, %v1014
      %v1016 = vsel %vm900, %v1006, %v1015
      %1017 = vrot.lane.b32.xlu0 %v917, 16
      %v1018 = vpop.permute.xlu0 %1017
      %1019 = vrot.lane.b32.xlu0 %v926, 16
      %v1020 = vpop.permute.xlu0 %1019
      %1021 = vrot.lane.b32.xlu0 %v935, 16
      %v1022 = vpop.permute.xlu0 %1021
      %1023 = vrot.lane.b32.xlu0 %v944, 16
      %v1024 = vpop.permute.xlu0 %1023
      %1025 = vrot.lane.b32.xlu0 %v953, 16
      %v1026 = vpop.permute.xlu0 %1025
      %1027 = vrot.lane.b32.xlu0 %v962, 16
      %v1028 = vpop.permute.xlu0 %1027
      %1029 = vrot.lane.b32.xlu0 %v971, 16
      %v1030 = vpop.permute.xlu0 %1029
      %1031 = vrot.lane.b32.xlu0 %v980, 16
      %v1032 = vpop.permute.xlu0 %1031
      %1033 = vrot.lane.b32.xlu0 %v989, 16
      %v1034 = vpop.permute.xlu0 %1033
      %1035 = vrot.lane.b32.xlu0 %v998, 16
      %v1036 = vpop.permute.xlu0 %1035
      %1037 = vrot.lane.b32.xlu0 %v1007, 16
      %v1038 = vpop.permute.xlu0 %1037
      %1039 = vrot.lane.b32.xlu0 %v1016, 16
      %v1040 = vpop.permute.xlu0 %1039
      %vm1053 = vcmask 162944
      %1054 = vst.msk [vmem:[#allocation3] sm:$0xff] %vm1053, %v1018
      %1055 = vst.msk [vmem:[#allocation3 + $0x8] sm:$0xff] %vm1053, %v1020
      %1056 = vst.msk [vmem:[#allocation3 + $0x10] sm:$0xff] %vm1053, %v1022
      %1057 = vst.msk [vmem:[#allocation3 + $0x18] sm:$0xff] %vm1053, %v1024
      %1058 = vst.msk [vmem:[#allocation3 + $0x20] sm:$0xff] %vm1053, %v1026
      %1059 = vst.msk [vmem:[#allocation3 + $0x28] sm:$0xff] %vm1053, %v1028
      %1060 = vst.msk [vmem:[#allocation3 + $0x30] sm:$0xff] %vm1053, %v1030
      %1061 = vst.msk [vmem:[#allocation3 + $0x38] sm:$0xff] %vm1053, %v1032
      %1062 = vst.msk [vmem:[#allocation3 + $0x40] sm:$0xff] %vm1053, %v1034
      %1063 = vst.msk [vmem:[#allocation3 + $0x48] sm:$0xff] %vm1053, %v1036
      %1064 = vst.msk [vmem:[#allocation3 + $0x50] sm:$0xff] %vm1053, %v1038
      %1065 = vst.msk [vmem:[#allocation3 + $0x58] sm:$0xff] %vm1053, %v1040
      %v1066 = vld [vmem:[#allocation2 + $0x8] sm:$0xe0]
      %v1067 = vld [vmem:[#allocation2 + $0x10] sm:$0xff]
      %v1068 = vld [vmem:[#allocation2 + $0x18] sm:$0xff]
      %v1069 = vld [vmem:[#allocation2 + $0x20] sm:$0xff]
      %v1070 = vld [vmem:[#allocation2 + $0x28] sm:$0xff]
      %v1071 = vld [vmem:[#allocation2 + $0x30] sm:$0xff]
      %v1072 = vld [vmem:[#allocation2 + $0x38] sm:$0xff]
      %v1073 = vld [vmem:[#allocation2 + $0x40] sm:$0xff]
      %v1074 = vld [vmem:[#allocation2 + $0x48] sm:$0xff]
      %v1075 = vld [vmem:[#allocation2 + $0x50] sm:$0xff]
      %v1076 = vld [vmem:[#allocation2 + $0x58] sm:$0xff]
      %v1077 = vld [vmem:[#allocation2 + $0x60] sm:$0xff]
      %v1078 = vld [vmem:[#allocation2 + $0x68] sm:$0x1f]
      %vm1092 = vcmask 1042432
      %v1093 = vrot.slane %v1066, 5
      %v1094 = vrot.slane %v1067, 5
      %v1095 = vsel %vm1092, %v1093, %v1094
      %v1096 = vrot.slane %v1068, 5
      %v1097 = vsel %vm1092, %v1094, %v1096
      %v1098 = vrot.slane %v1069, 5
      %v1099 = vsel %vm1092, %v1096, %v1098
      %v1100 = vrot.slane %v1070, 5
      %v1101 = vsel %vm1092, %v1098, %v1100
      %v1102 = vrot.slane %v1071, 5
      %v1103 = vsel %vm1092, %v1100, %v1102
      %v1104 = vrot.slane %v1072, 5
      %v1105 = vsel %vm1092, %v1102, %v1104
      %v1106 = vrot.slane %v1073, 5
      %v1107 = vsel %vm1092, %v1104, %v1106
      %v1108 = vrot.slane %v1074, 5
      %v1109 = vsel %vm1092, %v1106, %v1108
      %v1110 = vrot.slane %v1075, 5
      %v1111 = vsel %vm1092, %v1108, %v1110
      %v1112 = vrot.slane %v1076, 5
      %v1113 = vsel %vm1092, %v1110, %v1112
      %v1114 = vrot.slane %v1077, 5
      %v1115 = vsel %vm1092, %v1112, %v1114
      %v1116 = vrot.slane %v1078, 5
      %v1117 = vsel %vm1092, %v1114, %v1116
      %1118 = vrot.lane.b32.xlu0 %v1095, 20
      %v1119 = vpop.permute.xlu0 %1118
      %1120 = vrot.lane.b32.xlu0 %v1097, 20
      %v1121 = vpop.permute.xlu0 %1120
      %1122 = vrot.lane.b32.xlu0 %v1099, 20
      %v1123 = vpop.permute.xlu0 %1122
      %1124 = vrot.lane.b32.xlu0 %v1101, 20
      %v1125 = vpop.permute.xlu0 %1124
      %1126 = vrot.lane.b32.xlu0 %v1103, 20
      %v1127 = vpop.permute.xlu0 %1126
      %1128 = vrot.lane.b32.xlu0 %v1105, 20
      %v1129 = vpop.permute.xlu0 %1128
      %1130 = vrot.lane.b32.xlu0 %v1107, 20
      %v1131 = vpop.permute.xlu0 %1130
      %1132 = vrot.lane.b32.xlu0 %v1109, 20
      %v1133 = vpop.permute.xlu0 %1132
      %1134 = vrot.lane.b32.xlu0 %v1111, 20
      %v1135 = vpop.permute.xlu0 %1134
      %1136 = vrot.lane.b32.xlu0 %v1113, 20
      %v1137 = vpop.permute.xlu0 %1136
      %1138 = vrot.lane.b32.xlu0 %v1115, 20
      %v1139 = vpop.permute.xlu0 %1138
      %1140 = vrot.lane.b32.xlu0 %v1117, 20
      %v1141 = vpop.permute.xlu0 %1140
      %vm1154 = vcmask 195744
      %1155 = vst.msk [vmem:[#allocation3] sm:$0xff] %vm1154, %v1119
      %1156 = vst.msk [vmem:[#allocation3 + $0x8] sm:$0xff] %vm1154, %v1121
      %1157 = vst.msk [vmem:[#allocation3 + $0x10] sm:$0xff] %vm1154, %v1123
      %1158 = vst.msk [vmem:[#allocation3 + $0x18] sm:$0xff] %vm1154, %v1125
      %1159 = vst.msk [vmem:[#allocation3 + $0x20] sm:$0xff] %vm1154, %v1127
      %1160 = vst.msk [vmem:[#allocation3 + $0x28] sm:$0xff] %vm1154, %v1129
      %1161 = vst.msk [vmem:[#allocation3 + $0x30] sm:$0xff] %vm1154, %v1131
      %1162 = vst.msk [vmem:[#allocation3 + $0x38] sm:$0xff] %vm1154, %v1133
      %1163 = vst.msk [vmem:[#allocation3 + $0x40] sm:$0xff] %vm1154, %v1135
      %1164 = vst.msk [vmem:[#allocation3 + $0x48] sm:$0xff] %vm1154, %v1137
      %1165 = vst.msk [vmem:[#allocation3 + $0x50] sm:$0xff] %vm1154, %v1139
      %1166 = vst.msk [vmem:[#allocation3 + $0x58] sm:$0xff] %vm1154, %v1141
      %v1167 = vld [vmem:[#allocation2 + $0x18] sm:$0xff]
      %v1168 = vld [vmem:[#allocation2 + $0x20] sm:$0xff]
      %v1169 = vld [vmem:[#allocation2 + $0x28] sm:$0xff]
      %v1170 = vld [vmem:[#allocation2 + $0x30] sm:$0xff]
      %v1171 = vld [vmem:[#allocation2 + $0x38] sm:$0xff]
      %v1172 = vld [vmem:[#allocation2 + $0x40] sm:$0xff]
      %v1173 = vld [vmem:[#allocation2 + $0x48] sm:$0xff]
      %v1174 = vld [vmem:[#allocation2 + $0x50] sm:$0xff]
      %v1175 = vld [vmem:[#allocation2 + $0x58] sm:$0xff]
      %v1176 = vld [vmem:[#allocation2 + $0x60] sm:$0xff]
      %v1177 = vld [vmem:[#allocation2 + $0x68] sm:$0xff]
      %v1178 = vld [vmem:[#allocation2 + $0x70] sm:$0xff]
      %1191 = vrot.lane.b32.xlu0 %v1167, 24
      %v1192 = vpop.permute.xlu0 %1191
      %1193 = vrot.lane.b32.xlu0 %v1168, 24
      %v1194 = vpop.permute.xlu0 %1193
      %1195 = vrot.lane.b32.xlu0 %v1169, 24
      %v1196 = vpop.permute.xlu0 %1195
      %1197 = vrot.lane.b32.xlu0 %v1170, 24
      %v1198 = vpop.permute.xlu0 %1197
      %1199 = vrot.lane.b32.xlu0 %v1171, 24
      %v1200 = vpop.permute.xlu0 %1199
      %1201 = vrot.lane.b32.xlu0 %v1172, 24
      %v1202 = vpop.permute.xlu0 %1201
      %1203 = vrot.lane.b32.xlu0 %v1173, 24
      %v1204 = vpop.permute.xlu0 %1203
      %1205 = vrot.lane.b32.xlu0 %v1174, 24
      %v1206 = vpop.permute.xlu0 %1205
      %1207 = vrot.lane.b32.xlu0 %v1175, 24
      %v1208 = vpop.permute.xlu0 %1207
      %1209 = vrot.lane.b32.xlu0 %v1176, 24
      %v1210 = vpop.permute.xlu0 %1209
      %1211 = vrot.lane.b32.xlu0 %v1177, 24
      %v1212 = vpop.permute.xlu0 %1211
      %1213 = vrot.lane.b32.xlu0 %v1178, 24
      %v1214 = vpop.permute.xlu0 %1213
      %vm1227 = vcmask 228544
      %1228 = vst.msk [vmem:[#allocation3] sm:$0xff] %vm1227, %v1192
      %1229 = vst.msk [vmem:[#allocation3 + $0x8] sm:$0xff] %vm1227, %v1194
      %1230 = vst.msk [vmem:[#allocation3 + $0x10] sm:$0xff] %vm1227, %v1196
      %1231 = vst.msk [vmem:[#allocation3 + $0x18] sm:$0xff] %vm1227, %v1198
      %1232 = vst.msk [vmem:[#allocation3 + $0x20] sm:$0xff] %vm1227, %v1200
      %1233 = vst.msk [vmem:[#allocation3 + $0x28] sm:$0xff] %vm1227, %v1202
      %1234 = vst.msk [vmem:[#allocation3 + $0x30] sm:$0xff] %vm1227, %v1204
      %1235 = vst.msk [vmem:[#allocation3 + $0x38] sm:$0xff] %vm1227, %v1206
      %1236 = vst.msk [vmem:[#allocation3 + $0x40] sm:$0xff] %vm1227, %v1208
      %1237 = vst.msk [vmem:[#allocation3 + $0x48] sm:$0xff] %vm1227, %v1210
      %1238 = vst.msk [vmem:[#allocation3 + $0x50] sm:$0xff] %vm1227, %v1212
      %1239 = vst.msk [vmem:[#allocation3 + $0x58] sm:$0xff] %vm1227, %v1214
      %v1240 = vld [vmem:[#allocation2 + $0x18] sm:$0xff]
      %v1241 = vld [vmem:[#allocation2 + $0x20] sm:$0xff]
      %v1242 = vld [vmem:[#allocation2 + $0x28] sm:$0xff]
      %v1243 = vld [vmem:[#allocation2 + $0x30] sm:$0xff]
      %v1244 = vld [vmem:[#allocation2 + $0x38] sm:$0xff]
      %v1245 = vld [vmem:[#allocation2 + $0x40] sm:$0xff]
      %v1246 = vld [vmem:[#allocation2 + $0x48] sm:$0xff]
      %v1247 = vld [vmem:[#allocation2 + $0x50] sm:$0xff]
      %v1248 = vld [vmem:[#allocation2 + $0x58] sm:$0xff]
      %v1249 = vld [vmem:[#allocation2 + $0x60] sm:$0xff]
      %v1250 = vld [vmem:[#allocation2 + $0x68] sm:$0xff]
      %v1251 = vld [vmem:[#allocation2 + $0x70] sm:$0xff]
      %v1252 = vld [vmem:[#allocation2 + $0x78] sm:$0x1]
      %v1254 = vshrl.u32 %v1240, 16
      %v1256 = vshll.u32 %v1240, 16
      %v1258 = vrot.slane %v1256, 1
      %v1259 = vor.u32 %v1254, %v1258
      %v1261 = vshll.u32 %v1241, 16
      %v1263 = vrot.slane %v1261, 1
      %v1264 = vsel %vm535, %v1259, %v1263
      %v1265 = vshrl.u32 %v1241, 16
      %v1267 = vor.u32 %v1265, %v1263
      %v1269 = vshll.u32 %v1242, 16
      %v1271 = vrot.slane %v1269, 1
      %v1272 = vsel %vm535, %v1267, %v1271
      %v1273 = vshrl.u32 %v1242, 16
      %v1275 = vor.u32 %v1273, %v1271
      %v1277 = vshll.u32 %v1243, 16
      %v1279 = vrot.slane %v1277, 1
      %v1280 = vsel %vm535, %v1275, %v1279
      %v1281 = vshrl.u32 %v1243, 16
      %v1283 = vor.u32 %v1281, %v1279
      %v1285 = vshll.u32 %v1244, 16
      %v1287 = vrot.slane %v1285, 1
      %v1288 = vsel %vm535, %v1283, %v1287
      %v1289 = vshrl.u32 %v1244, 16
      %v1291 = vor.u32 %v1289, %v1287
      %v1293 = vshll.u32 %v1245, 16
      %v1295 = vrot.slane %v1293, 1
      %v1296 = vsel %vm535, %v1291, %v1295
      %v1297 = vshrl.u32 %v1245, 16
      %v1299 = vor.u32 %v1297, %v1295
      %v1301 = vshll.u32 %v1246, 16
      %v1303 = vrot.slane %v1301, 1
      %v1304 = vsel %vm535, %v1299, %v1303
      %v1305 = vshrl.u32 %v1246, 16
      %v1307 = vor.u32 %v1305, %v1303
      %v1309 = vshll.u32 %v1247, 16
      %v1311 = vrot.slane %v1309, 1
      %v1312 = vsel %vm535, %v1307, %v1311
      %v1313 = vshrl.u32 %v1247, 16
      %v1315 = vor.u32 %v1313, %v1311
      %v1317 = vshll.u32 %v1248, 16
      %v1319 = vrot.slane %v1317, 1
      %v1320 = vsel %vm535, %v1315, %v1319
      %v1321 = vshrl.u32 %v1248, 16
      %v1323 = vor.u32 %v1321, %v1319
      %v1325 = vshll.u32 %v1249, 16
      %v1327 = vrot.slane %v1325, 1
      %v1328 = vsel %vm535, %v1323, %v1327
      %v1329 = vshrl.u32 %v1249, 16
      %v1331 = vor.u32 %v1329, %v1327
      %v1333 = vshll.u32 %v1250, 16
      %v1335 = vrot.slane %v1333, 1
      %v1336 = vsel %vm535, %v1331, %v1335
      %v1337 = vshrl.u32 %v1250, 16
      %v1339 = vor.u32 %v1337, %v1335
      %v1341 = vshll.u32 %v1251, 16
      %v1343 = vrot.slane %v1341, 1
      %v1344 = vsel %vm535, %v1339, %v1343
      %v1345 = vshrl.u32 %v1251, 16
      %v1347 = vor.u32 %v1345, %v1343
      %v1349 = vshll.u32 %v1252, 16
      %v1351 = vrot.slane %v1349, 1
      %v1352 = vsel %vm535, %v1347, %v1351
      %1353 = vrot.lane.b32.xlu0 %v1264, 28
      %v1354 = vpop.permute.xlu0 %1353
      %1355 = vrot.lane.b32.xlu0 %v1272, 28
      %v1356 = vpop.permute.xlu0 %1355
      %1357 = vrot.lane.b32.xlu0 %v1280, 28
      %v1358 = vpop.permute.xlu0 %1357
      %1359 = vrot.lane.b32.xlu0 %v1288, 28
      %v1360 = vpop.permute.xlu0 %1359
      %1361 = vrot.lane.b32.xlu0 %v1296, 28
      %v1362 = vpop.permute.xlu0 %1361
      %1363 = vrot.lane.b32.xlu0 %v1304, 28
      %v1364 = vpop.permute.xlu0 %1363
      %1365 = vrot.lane.b32.xlu0 %v1312, 28
      %v1366 = vpop.permute.xlu0 %1365
      %1367 = vrot.lane.b32.xlu0 %v1320, 28
      %v1368 = vpop.permute.xlu0 %1367
      %1369 = vrot.lane.b32.xlu0 %v1328, 28
      %v1370 = vpop.permute.xlu0 %1369
      %1371 = vrot.lane.b32.xlu0 %v1336, 28
      %v1372 = vpop.permute.xlu0 %1371
      %1373 = vrot.lane.b32.xlu0 %v1344, 28
      %v1374 = vpop.permute.xlu0 %1373
      %1375 = vrot.lane.b32.xlu0 %v1352, 28
      %v1376 = vpop.permute.xlu0 %1375
      %vm1389 = vcmask 261344
      %1390 = vst.msk [vmem:[#allocation3] sm:$0xff] %vm1389, %v1354
      %1391 = vst.msk [vmem:[#allocation3 + $0x8] sm:$0xff] %vm1389, %v1356
      %1392 = vst.msk [vmem:[#allocation3 + $0x10] sm:$0xff] %vm1389, %v1358
      %1393 = vst.msk [vmem:[#allocation3 + $0x18] sm:$0xff] %vm1389, %v1360
      %1394 = vst.msk [vmem:[#allocation3 + $0x20] sm:$0xff] %vm1389, %v1362
      %1395 = vst.msk [vmem:[#allocation3 + $0x28] sm:$0xff] %vm1389, %v1364
      %1396 = vst.msk [vmem:[#allocation3 + $0x30] sm:$0xff] %vm1389, %v1366
      %1397 = vst.msk [vmem:[#allocation3 + $0x38] sm:$0xff] %vm1389, %v1368
      %1398 = vst.msk [vmem:[#allocation3 + $0x40] sm:$0xff] %vm1389, %v1370
      %1399 = vst.msk [vmem:[#allocation3 + $0x48] sm:$0xff] %vm1389, %v1372
      %1400 = vst.msk [vmem:[#allocation3 + $0x50] sm:$0xff] %vm1389, %v1374
      %1401 = vst.msk [vmem:[#allocation3 + $0x58] sm:$0xff] %vm1389, %v1376
      %v1402 = vld [vmem:[#allocation2 + $0x18] sm:$0xfe]
      %v1403 = vld [vmem:[#allocation2 + $0x20] sm:$0xff]
      %v1404 = vld [vmem:[#allocation2 + $0x28] sm:$0xff]
      %v1405 = vld [vmem:[#allocation2 + $0x30] sm:$0xff]
      %v1406 = vld [vmem:[#allocation2 + $0x38] sm:$0xff]
      %v1407 = vld [vmem:[#allocation2 + $0x40] sm:$0xff]
      %v1408 = vld [vmem:[#allocation2 + $0x48] sm:$0xff]
      %v1409 = vld [vmem:[#allocation2 + $0x50] sm:$0xff]
      %v1410 = vld [vmem:[#allocation2 + $0x58] sm:$0xff]
      %v1411 = vld [vmem:[#allocation2 + $0x60] sm:$0xff]
      %v1412 = vld [vmem:[#allocation2 + $0x68] sm:$0xff]
      %v1413 = vld [vmem:[#allocation2 + $0x70] sm:$0xff]
      %v1414 = vld [vmem:[#allocation2 + $0x78] sm:$0x1]
      %v1428 = vrot.slane %v1402, 1
      %v1429 = vrot.slane %v1403, 1
      %v1430 = vsel %vm711, %v1428, %v1429
      %v1431 = vrot.slane %v1404, 1
      %v1432 = vsel %vm711, %v1429, %v1431
      %v1433 = vrot.slane %v1405, 1
      %v1434 = vsel %vm711, %v1431, %v1433
      %v1435 = vrot.slane %v1406, 1
      %v1436 = vsel %vm711, %v1433, %v1435
      %v1437 = vrot.slane %v1407, 1
      %v1438 = vsel %vm711, %v1435, %v1437
      %v1439 = vrot.slane %v1408, 1
      %v1440 = vsel %vm711, %v1437, %v1439
      %v1441 = vrot.slane %v1409, 1
      %v1442 = vsel %vm711, %v1439, %v1441
      %v1443 = vrot.slane %v1410, 1
      %v1444 = vsel %vm711, %v1441, %v1443
      %v1445 = vrot.slane %v1411, 1
      %v1446 = vsel %vm711, %v1443, %v1445
      %v1447 = vrot.slane %v1412, 1
      %v1448 = vsel %vm711, %v1445, %v1447
      %v1449 = vrot.slane %v1413, 1
      %v1450 = vsel %vm711, %v1447, %v1449
      %v1451 = vrot.slane %v1414, 1
      %v1452 = vsel %vm711, %v1449, %v1451
      %1453 = vrot.lane.b32.xlu0 %v1430, 32
      %v1454 = vpop.permute.xlu0 %1453
      %1455 = vrot.lane.b32.xlu0 %v1432, 32
      %v1456 = vpop.permute.xlu0 %1455
      %1457 = vrot.lane.b32.xlu0 %v1434, 32
      %v1458 = vpop.permute.xlu0 %1457
      %1459 = vrot.lane.b32.xlu0 %v1436, 32
      %v1460 = vpop.permute.xlu0 %1459
      %1461 = vrot.lane.b32.xlu0 %v1438, 32
      %v1462 = vpop.permute.xlu0 %1461
      %1463 = vrot.lane.b32.xlu0 %v1440, 32
      %v1464 = vpop.permute.xlu0 %1463
      %1465 = vrot.lane.b32.xlu0 %v1442, 32
      %v1466 = vpop.permute.xlu0 %1465
      %1467 = vrot.lane.b32.xlu0 %v1444, 32
      %v1468 = vpop.permute.xlu0 %1467
      %1469 = vrot.lane.b32.xlu0 %v1446, 32
      %v1470 = vpop.permute.xlu0 %1469
      %1471 = vrot.lane.b32.xlu0 %v1448, 32
      %v1472 = vpop.permute.xlu0 %1471
      %1473 = vrot.lane.b32.xlu0 %v1450, 32
      %v1474 = vpop.permute.xlu0 %1473
      %1475 = vrot.lane.b32.xlu0 %v1452, 32
      %v1476 = vpop.permute.xlu0 %1475
      %vm1489 = vcmask 294144
      %1490 = vst.msk [vmem:[#allocation3] sm:$0xff] %vm1489, %v1454
      %1491 = vst.msk [vmem:[#allocation3 + $0x8] sm:$0xff] %vm1489, %v1456
      %1492 = vst.msk [vmem:[#allocation3 + $0x10] sm:$0xff] %vm1489, %v1458
      %1493 = vst.msk [vmem:[#allocation3 + $0x18] sm:$0xff] %vm1489, %v1460
      %1494 = vst.msk [vmem:[#allocation3 + $0x20] sm:$0xff] %vm1489, %v1462
      %1495 = vst.msk [vmem:[#allocation3 + $0x28] sm:$0xff] %vm1489, %v1464
      %1496 = vst.msk [vmem:[#allocation3 + $0x30] sm:$0xff] %vm1489, %v1466
      %1497 = vst.msk [vmem:[#allocation3 + $0x38] sm:$0xff] %vm1489, %v1468
      %1498 = vst.msk [vmem:[#allocation3 + $0x40] sm:$0xff] %vm1489, %v1470
      %1499 = vst.msk [vmem:[#allocation3 + $0x48] sm:$0xff] %vm1489, %v1472
      %1500 = vst.msk [vmem:[#allocation3 + $0x50] sm:$0xff] %vm1489, %v1474
      %1501 = vst.msk [vmem:[#allocation3 + $0x58] sm:$0xff] %vm1489, %v1476
      %v1502 = vld [vmem:[#allocation3] sm:$0xff]
      %v1503 = vld [vmem:[#allocation3 + $0x8] sm:$0xff]
      %v1504 = vld [vmem:[#allocation3 + $0x10] sm:$0xff]
      %v1505 = vld [vmem:[#allocation3 + $0x18] sm:$0xff]
      %v1506 = vld [vmem:[#allocation3 + $0x20] sm:$0xff]
      %v1507 = vld [vmem:[#allocation3 + $0x28] sm:$0xff]
      %v1508 = vld [vmem:[#allocation3 + $0x30] sm:$0xff]
      %v1509 = vld [vmem:[#allocation3 + $0x38] sm:$0xff]
      %v1510 = vld [vmem:[#allocation3 + $0x40] sm:$0xff]
      %v1511 = vld [vmem:[#allocation3 + $0x48] sm:$0xff]
      %v1512 = vld [vmem:[#allocation3 + $0x50] sm:$0xff]
      %v1513 = vld [vmem:[#allocation3 + $0x58] sm:$0xff]
      %v1514 = vld [vmem:[%s2] sm:$0xf]
      %v1515 = vld [vmem:[%s2 + $0x4] sm:$0xf]
      %v1516 = vld [vmem:[%s2 + $0x8] sm:$0xf]
      %v1517 = vld [vmem:[%s2 + $0xc] sm:$0xf]
      %v1518 = vld [vmem:[%s2 + $0x10] sm:$0x3]
      %v1519 = vld [vmem:[%s3] sm:$0x1]
      %v1521 = vlaneseq
      %v1522 = vshrl.u32 %v1521, 7
      %v1523 = vsub.s32 0, %v1522
      %v1524 = vrot.slane %v1519, %v1523
      %v1531 = vunpack.c.l.b16 %v1514
      %v1532 = vunpack.c.l.b16 %v1515
      %v1533 = vunpack.c.l.b16 %v1516
      %v1534 = vunpack.c.l.b16 %v1517
      %v1535 = vunpack.c.l.b16 %v1518
      %v1536 = vpack.c.b16 %v1532, %v1531
      %v1537 = vpack.c.b16 %v1534, %v1533
      %v1538 = vpack.c.b16 %v1535, %v1535
      %vm1541 = vcmask 293888
      %v1543 = vsel %vm1541, %v1502, 0
      %v1546 = vsel %vm1541, %v1503, 0
      %v1549 = vsel %vm1541, %v1504, 0
      %v1552 = vsel %vm1541, %v1505, 0
      %v1555 = vsel %vm1541, %v1506, 0
      %v1558 = vsel %vm1541, %v1507, 0
      %v1561 = vsel %vm1541, %v1508, 0
      %v1564 = vsel %vm1541, %v1509, 0
      %v1567 = vsel %vm1541, %v1510, 0
      %v1570 = vsel %vm1541, %v1511, 0
      %v1573 = vsel %vm1541, %v1512, 0
      %v1576 = vsel %vm1541, %v1513, 0
      %vm1578 = vcmask 1041408
      %v1580 = vsel %vm1578, %v1538, 0
      %1582 = vmatprep.subr.bf16.mxu0 0
      %1583 = vmatpush1.bf16.msra.mxu0 %v1536
      %1584 = vmatprep.subr.bf16.mxu0 0
      %1585 = vmatpush1.bf16.msra.mxu0 %v1537
      %1586 = vmatprep.subr.bf16.mxu0 0
      %1587 = vmatpush1.bf16.msra.mxu0 %v1580
      %1588 = vmatprep.subr.bf16.mxu0 0
      %1589 = vmatpush1.bf16.msra.mxu0 0
      %1590 = vmatprep.subr.bf16.mxu0 0
      %1591 = vmatpush1.bf16.msra.mxu0 0
      %1592 = vmatprep.subr.bf16.mxu0 0
      %1593 = vmatpush1.bf16.msra.mxu0 0
      %1594 = vmatprep.subr.bf16.mxu0 0
      %1595 = vmatpush1.bf16.msra.mxu0 0
      %1596 = vmatprep.subr.bf16.mxu0 0
      %1597 = vmatpush1.bf16.msra.mxu0 0
      %1598 = vmatprep.subr.bf16.mxu0 0
      %1599 = vmatpush1.bf16.msra.mxu0 0
      %1600 = vmatprep.subr.bf16.mxu0 0
      %1601 = vmatpush1.bf16.msra.mxu0 0
      %1602 = vmatprep.subr.bf16.mxu0 0
      %1603 = vmatpush1.bf16.msra.mxu0 0
      %1604 = vmatprep.subr.bf16.mxu0 0
      %1605 = vmatpush1.bf16.msra.mxu0 0
      %1606 = vmatprep.subr.bf16.mxu0 0
      %1607 = vmatpush1.bf16.msra.mxu0 0
      %1608 = vmatprep.subr.bf16.mxu0 0
      %1609 = vmatpush1.bf16.msra.mxu0 0
      %1610 = vmatprep.subr.bf16.mxu0 0
      %1611 = vmatpush1.bf16.msra.mxu0 0
      %1612 = vmatprep.subr.bf16.mxu0 0
      %1613 = vmatpush1.bf16.msra.mxu0 0
      %1614 = vmatprep.mubr.bf16.mxu0 0
      %1615 = vmatmul.mubr.bf16.gmra.mrb[0].mxu0 %v1543
      %v1616 = vpop.f32.mrb[0].mxu0
      %v1617 = vadd.f32 %v1524, %v1616
      %v1618 = vpop.f32.mrb[0].mxu0
      %v1619 = vpop.f32.mrb[0].mxu0
      %v1620 = vadd.f32 %v1524, %v1619
      %v1621 = vpop.f32.mrb[0].mxu0
      %1622 = vmatprep.mubr.bf16.mxu0 0
      %1623 = vmatmul.mubr.bf16.gmra.mrb[0].mxu0 %v1546
      %v1624 = vpop.f32.mrb[0].mxu0
      %v1625 = vadd.f32 %v1524, %v1624
      %v1626 = vpop.f32.mrb[0].mxu0
      %v1627 = vpop.f32.mrb[0].mxu0
      %v1628 = vadd.f32 %v1524, %v1627
      %v1629 = vpop.f32.mrb[0].mxu0
      %1630 = vmatprep.mubr.bf16.mxu0 0
      %1631 = vmatmul.mubr.bf16.gmra.mrb[0].mxu0 %v1549
      %v1632 = vpop.f32.mrb[0].mxu0
      %v1633 = vadd.f32 %v1524, %v1632
      %v1634 = vpop.f32.mrb[0].mxu0
      %v1635 = vpop.f32.mrb[0].mxu0
      %v1636 = vadd.f32 %v1524, %v1635
      %v1637 = vpop.f32.mrb[0].mxu0
      %1638 = vmatprep.mubr.bf16.mxu0 0
      %1639 = vmatmul.mubr.bf16.gmra.mrb[0].mxu0 %v1552
      %v1640 = vpop.f32.mrb[0].mxu0
      %v1641 = vadd.f32 %v1524, %v1640
      %v1642 = vpop.f32.mrb[0].mxu0
      %v1643 = vpop.f32.mrb[0].mxu0
      %v1644 = vadd.f32 %v1524, %v1643
      %v1645 = vpop.f32.mrb[0].mxu0
      %1646 = vmatprep.mubr.bf16.mxu0 0
      %1647 = vmatmul.mubr.bf16.gmra.mrb[0].mxu0 %v1555
      %v1648 = vpop.f32.mrb[0].mxu0
      %v1649 = vadd.f32 %v1524, %v1648
      %v1650 = vpop.f32.mrb[0].mxu0
      %v1651 = vpop.f32.mrb[0].mxu0
      %v1652 = vadd.f32 %v1524, %v1651
      %v1653 = vpop.f32.mrb[0].mxu0
      %1654 = vmatprep.mubr.bf16.mxu0 0
      %1655 = vmatmul.mubr.bf16.gmra.mrb[0].mxu0 %v1558
      %v1656 = vpop.f32.mrb[0].mxu0
      %v1657 = vadd.f32 %v1524, %v1656
      %v1658 = vpop.f32.mrb[0].mxu0
      %v1659 = vpop.f32.mrb[0].mxu0
      %v1660 = vadd.f32 %v1524, %v1659
      %v1661 = vpop.f32.mrb[0].mxu0
      %1662 = vmatprep.mubr.bf16.mxu0 0
      %1663 = vmatmul.mubr.bf16.gmra.mrb[0].mxu0 %v1561
      %v1664 = vpop.f32.mrb[0].mxu0
      %v1665 = vadd.f32 %v1524, %v1664
      %v1666 = vpop.f32.mrb[0].mxu0
      %v1667 = vpop.f32.mrb[0].mxu0
      %v1668 = vadd.f32 %v1524, %v1667
      %v1669 = vpop.f32.mrb[0].mxu0
      %1670 = vmatprep.mubr.bf16.mxu0 0
      %1671 = vmatmul.mubr.bf16.gmra.mrb[0].mxu0 %v1564
      %v1672 = vpop.f32.mrb[0].mxu0
      %v1673 = vadd.f32 %v1524, %v1672
      %v1674 = vpop.f32.mrb[0].mxu0
      %v1675 = vpop.f32.mrb[0].mxu0
      %v1676 = vadd.f32 %v1524, %v1675
      %v1677 = vpop.f32.mrb[0].mxu0
      %1678 = vmatprep.mubr.bf16.mxu0 0
      %1679 = vmatmul.mubr.bf16.gmra.mrb[0].mxu0 %v1567
      %v1680 = vpop.f32.mrb[0].mxu0
      %v1681 = vadd.f32 %v1524, %v1680
      %v1682 = vpop.f32.mrb[0].mxu0
      %v1683 = vpop.f32.mrb[0].mxu0
      %v1684 = vadd.f32 %v1524, %v1683
      %v1685 = vpop.f32.mrb[0].mxu0
      %1686 = vmatprep.mubr.bf16.mxu0 0
      %1687 = vmatmul.mubr.bf16.gmra.mrb[0].mxu0 %v1570
      %v1688 = vpop.f32.mrb[0].mxu0
      %v1689 = vadd.f32 %v1524, %v1688
      %v1690 = vpop.f32.mrb[0].mxu0
      %v1691 = vpop.f32.mrb[0].mxu0
      %v1692 = vadd.f32 %v1524, %v1691
      %v1693 = vpop.f32.mrb[0].mxu0
      %1694 = vmatprep.mubr.bf16.mxu0 0
      %1695 = vmatmul.mubr.bf16.gmra.mrb[0].mxu0 %v1573
      %v1696 = vpop.f32.mrb[0].mxu0
      %v1697 = vadd.f32 %v1524, %v1696
      %v1698 = vpop.f32.mrb[0].mxu0
      %v1699 = vpop.f32.mrb[0].mxu0
      %v1700 = vadd.f32 %v1524, %v1699
      %v1701 = vpop.f32.mrb[0].mxu0
      %1702 = vmatprep.mubr.bf16.mxu0 0
      %1703 = vmatmul.mubr.bf16.gmra.mrb[0].mxu0 %v1576
      %v1704 = vpop.f32.mrb[0].mxu0
      %v1705 = vadd.f32 %v1524, %v1704
      %v1706 = vpop.f32.mrb[0].mxu0
      %v1707 = vpop.f32.mrb[0].mxu0
      %v1708 = vadd.f32 %v1524, %v1707
      %v1709 = vpop.f32.mrb[0].mxu0
      %1710 = vdwg.mxu0
      %v1711 = vxor.u32 %v1617, 2147483648
      %v1712 = vxor.u32 %v1620, 2147483648
      %v1713 = vxor.u32 %v1625, 2147483648
      %v1714 = vxor.u32 %v1628, 2147483648
      %v1715 = vxor.u32 %v1633, 2147483648
      %v1716 = vxor.u32 %v1636, 2147483648
      %v1717 = vxor.u32 %v1641, 2147483648
      %v1718 = vxor.u32 %v1644, 2147483648
      %v1719 = vxor.u32 %v1649, 2147483648
      %v1720 = vxor.u32 %v1652, 2147483648
      %v1721 = vxor.u32 %v1657, 2147483648
      %v1722 = vxor.u32 %v1660, 2147483648
      %v1723 = vxor.u32 %v1665, 2147483648
      %v1724 = vxor.u32 %v1668, 2147483648
      %v1725 = vxor.u32 %v1673, 2147483648
      %v1726 = vxor.u32 %v1676, 2147483648
      %v1727 = vxor.u32 %v1681, 2147483648
      %v1728 = vxor.u32 %v1684, 2147483648
      %v1729 = vxor.u32 %v1689, 2147483648
      %v1730 = vxor.u32 %v1692, 2147483648
      %v1731 = vxor.u32 %v1697, 2147483648
      %v1732 = vxor.u32 %v1700, 2147483648
      %v1733 = vxor.u32 %v1705, 2147483648
      %v1734 = vxor.u32 %v1708, 2147483648
      %v1735 = vmul.f32 %v1711, 1.442695
      %v1736 = vpow.pop %v1735
      %v1737 = vmul.f32 %v1712, 1.442695
      %v1738 = vpow.pop %v1737
      %v1739 = vmul.f32 %v1713, 1.442695
      %v1740 = vpow.pop %v1739
      %v1741 = vmul.f32 %v1714, 1.442695
      %v1742 = vpow.pop %v1741
      %v1743 = vmul.f32 %v1715, 1.442695
      %v1744 = vpow.pop %v1743
      %v1745 = vmul.f32 %v1716, 1.442695
      %v1746 = vpow.pop %v1745
      %v1747 = vmul.f32 %v1717, 1.442695
      %v1748 = vpow.pop %v1747
      %v1749 = vmul.f32 %v1718, 1.442695
      %v1750 = vpow.pop %v1749
      %v1751 = vmul.f32 %v1719, 1.442695
      %v1752 = vpow.pop %v1751
      %v1753 = vmul.f32 %v1720, 1.442695
      %v1754 = vpow.pop %v1753
      %v1755 = vmul.f32 %v1721, 1.442695
      %v1756 = vpow.pop %v1755
      %v1757 = vmul.f32 %v1722, 1.442695
      %v1758 = vpow.pop %v1757
      %v1759 = vmul.f32 %v1723, 1.442695
      %v1760 = vpow.pop %v1759
      %v1761 = vmul.f32 %v1724, 1.442695
      %v1762 = vpow.pop %v1761
      %v1763 = vmul.f32 %v1725, 1.442695
      %v1764 = vpow.pop %v1763
      %v1765 = vmul.f32 %v1726, 1.442695
      %v1766 = vpow.pop %v1765
      %v1767 = vmul.f32 %v1727, 1.442695
      %v1768 = vpow.pop %v1767
      %v1769 = vmul.f32 %v1728, 1.442695
      %v1770 = vpow.pop %v1769
      %v1771 = vmul.f32 %v1729, 1.442695
      %v1772 = vpow.pop %v1771
      %v1773 = vmul.f32 %v1730, 1.442695
      %v1774 = vpow.pop %v1773
      %v1775 = vmul.f32 %v1731, 1.442695
      %v1776 = vpow.pop %v1775
      %v1777 = vmul.f32 %v1732, 1.442695
      %v1778 = vpow.pop %v1777
      %v1779 = vmul.f32 %v1733, 1.442695
      %v1780 = vpow.pop %v1779
      %v1781 = vmul.f32 %v1734, 1.442695
      %v1782 = vpow.pop %v1781
      %v1783 = vadd.f32 %v1736, 1.0
      %v1784 = vadd.f32 %v1738, 1.0
      %v1785 = vadd.f32 %v1740, 1.0
      %v1786 = vadd.f32 %v1742, 1.0
      %v1787 = vadd.f32 %v1744, 1.0
      %v1788 = vadd.f32 %v1746, 1.0
      %v1789 = vadd.f32 %v1748, 1.0
      %v1790 = vadd.f32 %v1750, 1.0
      %v1791 = vadd.f32 %v1752, 1.0
      %v1792 = vadd.f32 %v1754, 1.0
      %v1793 = vadd.f32 %v1756, 1.0
      %v1794 = vadd.f32 %v1758, 1.0
      %v1795 = vadd.f32 %v1760, 1.0
      %v1796 = vadd.f32 %v1762, 1.0
      %v1797 = vadd.f32 %v1764, 1.0
      %v1798 = vadd.f32 %v1766, 1.0
      %v1799 = vadd.f32 %v1768, 1.0
      %v1800 = vadd.f32 %v1770, 1.0
      %v1801 = vadd.f32 %v1772, 1.0
      %v1802 = vadd.f32 %v1774, 1.0
      %v1803 = vadd.f32 %v1776, 1.0
      %v1804 = vadd.f32 %v1778, 1.0
      %v1805 = vadd.f32 %v1780, 1.0
      %v1806 = vadd.f32 %v1782, 1.0
      %v1807 = vrcp.pop %v1783
      %v1808 = vmul.f32 1.0, %v1807
      %v1809 = vrcp.pop %v1784
      %v1810 = vmul.f32 1.0, %v1809
      %v1811 = vrcp.pop %v1785
      %v1812 = vmul.f32 1.0, %v1811
      %v1813 = vrcp.pop %v1786
      %v1814 = vmul.f32 1.0, %v1813
      %v1815 = vrcp.pop %v1787
      %v1816 = vmul.f32 1.0, %v1815
      %v1817 = vrcp.pop %v1788
      %v1818 = vmul.f32 1.0, %v1817
      %v1819 = vrcp.pop %v1789
      %v1820 = vmul.f32 1.0, %v1819
      %v1821 = vrcp.pop %v1790
      %v1822 = vmul.f32 1.0, %v1821
      %v1823 = vrcp.pop %v1791
      %v1824 = vmul.f32 1.0, %v1823
      %v1825 = vrcp.pop %v1792
      %v1826 = vmul.f32 1.0, %v1825
      %v1827 = vrcp.pop %v1793
      %v1828 = vmul.f32 1.0, %v1827
      %v1829 = vrcp.pop %v1794
      %v1830 = vmul.f32 1.0, %v1829
      %v1831 = vrcp.pop %v1795
      %v1832 = vmul.f32 1.0, %v1831
      %v1833 = vrcp.pop %v1796
      %v1834 = vmul.f32 1.0, %v1833
      %v1835 = vrcp.pop %v1797
      %v1836 = vmul.f32 1.0, %v1835
      %v1837 = vrcp.pop %v1798
      %v1838 = vmul.f32 1.0, %v1837
      %v1839 = vrcp.pop %v1799
      %v1840 = vmul.f32 1.0, %v1839
      %v1841 = vrcp.pop %v1800
      %v1842 = vmul.f32 1.0, %v1841
      %v1843 = vrcp.pop %v1801
      %v1844 = vmul.f32 1.0, %v1843
      %v1845 = vrcp.pop %v1802
      %v1846 = vmul.f32 1.0, %v1845
      %v1847 = vrcp.pop %v1803
      %v1848 = vmul.f32 1.0, %v1847
      %v1849 = vrcp.pop %v1804
      %v1850 = vmul.f32 1.0, %v1849
      %v1851 = vrcp.pop %v1805
      %v1852 = vmul.f32 1.0, %v1851
      %v1853 = vrcp.pop %v1806
      %v1854 = vmul.f32 1.0, %v1853
      %v1855 = vmul.f32 %v1617, %v1808
      %v1856 = vmul.f32 %v1620, %v1810
      %v1857 = vmul.f32 %v1625, %v1812
      %v1858 = vmul.f32 %v1628, %v1814
      %v1859 = vmul.f32 %v1633, %v1816
      %v1860 = vmul.f32 %v1636, %v1818
      %v1861 = vmul.f32 %v1641, %v1820
      %v1862 = vmul.f32 %v1644, %v1822
      %v1863 = vmul.f32 %v1649, %v1824
      %v1864 = vmul.f32 %v1652, %v1826
      %v1865 = vmul.f32 %v1657, %v1828
      %v1866 = vmul.f32 %v1660, %v1830
      %v1867 = vmul.f32 %v1665, %v1832
      %v1868 = vmul.f32 %v1668, %v1834
      %v1869 = vmul.f32 %v1673, %v1836
      %v1870 = vmul.f32 %v1676, %v1838
      %v1871 = vmul.f32 %v1681, %v1840
      %v1872 = vmul.f32 %v1684, %v1842
      %v1873 = vmul.f32 %v1689, %v1844
      %v1874 = vmul.f32 %v1692, %v1846
      %v1875 = vmul.f32 %v1697, %v1848
      %v1876 = vmul.f32 %v1700, %v1850
      %v1877 = vmul.f32 %v1705, %v1852
      %v1878 = vmul.f32 %v1708, %v1854
      %v1879 = vpack.c.bf16 %v1856, %v1855
      %v1880 = vpack.c.bf16 %v1858, %v1857
      %v1881 = vpack.c.bf16 %v1860, %v1859
      %v1882 = vpack.c.bf16 %v1862, %v1861
      %v1883 = vpack.c.bf16 %v1864, %v1863
      %v1884 = vpack.c.bf16 %v1866, %v1865
      %v1885 = vpack.c.bf16 %v1868, %v1867
      %v1886 = vpack.c.bf16 %v1870, %v1869
      %v1887 = vpack.c.bf16 %v1872, %v1871
      %v1888 = vpack.c.bf16 %v1874, %v1873
      %v1889 = vpack.c.bf16 %v1876, %v1875
      %v1890 = vpack.c.bf16 %v1878, %v1877
      %v1903 = vunpack.c.l.b16 %v1879
      %v1904 = vunpack.c.h.b16 %v1879
      %v1905 = vunpack.c.l.b16 %v1880
      %v1906 = vunpack.c.h.b16 %v1880
      %v1907 = vunpack.c.l.b16 %v1881
      %v1908 = vunpack.c.h.b16 %v1881
      %v1909 = vunpack.c.l.b16 %v1882
      %v1910 = vunpack.c.h.b16 %v1882
      %v1911 = vunpack.c.l.b16 %v1883
      %v1912 = vunpack.c.h.b16 %v1883
      %v1913 = vunpack.c.l.b16 %v1884
      %v1914 = vunpack.c.h.b16 %v1884
      %v1915 = vunpack.c.l.b16 %v1885
      %v1916 = vunpack.c.h.b16 %v1885
      %v1917 = vunpack.c.l.b16 %v1886
      %v1918 = vunpack.c.h.b16 %v1886
      %v1919 = vunpack.c.l.b16 %v1887
      %v1920 = vunpack.c.h.b16 %v1887
      %v1921 = vunpack.c.l.b16 %v1888
      %v1922 = vunpack.c.h.b16 %v1888
      %v1923 = vunpack.c.l.b16 %v1889
      %v1924 = vunpack.c.h.b16 %v1889
      %v1925 = vunpack.c.l.b16 %v1890
      %v1926 = vunpack.c.h.b16 %v1890
      %v1927 = vpack.c.b16 %v1903, %v1903
      %v1928 = vpack.c.b16 %v1904, %v1904
      %v1929 = vpack.c.b16 %v1905, %v1905
      %v1930 = vpack.c.b16 %v1906, %v1906
      %v1931 = vpack.c.b16 %v1907, %v1907
      %v1932 = vpack.c.b16 %v1908, %v1908
      %v1933 = vpack.c.b16 %v1909, %v1909
      %v1934 = vpack.c.b16 %v1910, %v1910
      %v1935 = vpack.c.b16 %v1911, %v1911
      %v1936 = vpack.c.b16 %v1912, %v1912
      %v1937 = vpack.c.b16 %v1913, %v1913
      %v1938 = vpack.c.b16 %v1914, %v1914
      %v1939 = vpack.c.b16 %v1915, %v1915
      %v1940 = vpack.c.b16 %v1916, %v1916
      %v1941 = vpack.c.b16 %v1917, %v1917
      %v1942 = vpack.c.b16 %v1918, %v1918
      %v1943 = vpack.c.b16 %v1919, %v1919
      %v1944 = vpack.c.b16 %v1920, %v1920
      %v1945 = vpack.c.b16 %v1921, %v1921
      %v1946 = vpack.c.b16 %v1922, %v1922
      %v1947 = vpack.c.b16 %v1923, %v1923
      %v1948 = vpack.c.b16 %v1924, %v1924
      %v1949 = vpack.c.b16 %v1925, %v1925
      %v1950 = vpack.c.b16 %v1926, %v1926
      %1975 = vst [vmem:[%s278] sm:$0xf] %v1927
      %1976 = vst [vmem:[%s278 + $0x4] sm:$0xf] %v1928
      %1977 = vst [vmem:[%s278 + $0x8] sm:$0xf] %v1929
      %1978 = vst [vmem:[%s278 + $0xc] sm:$0xf] %v1930
      %1979 = vst [vmem:[%s278 + $0x10] sm:$0xf] %v1931
      %1980 = vst [vmem:[%s278 + $0x14] sm:$0xf] %v1932
      %1981 = vst [vmem:[%s278 + $0x18] sm:$0xf] %v1933
      %1982 = vst [vmem:[%s278 + $0x1c] sm:$0xf] %v1934
      %1983 = vst [vmem:[%s278 + $0x20] sm:$0xf] %v1935
      %1984 = vst [vmem:[%s278 + $0x24] sm:$0xf] %v1936
      %1985 = vst [vmem:[%s278 + $0x28] sm:$0xf] %v1937
      %1986 = vst [vmem:[%s278 + $0x2c] sm:$0xf] %v1938
      %1987 = vst [vmem:[%s278 + $0x30] sm:$0xf] %v1939
      %1988 = vst [vmem:[%s278 + $0x34] sm:$0xf] %v1940
      %1989 = vst [vmem:[%s278 + $0x38] sm:$0xf] %v1941
      %1990 = vst [vmem:[%s278 + $0x3c] sm:$0xf] %v1942
      %1991 = vst [vmem:[%s278 + $0x40] sm:$0xf] %v1943
      %1992 = vst [vmem:[%s278 + $0x44] sm:$0xf] %v1944
      %1993 = vst [vmem:[%s278 + $0x48] sm:$0xf] %v1945
      %1994 = vst [vmem:[%s278 + $0x4c] sm:$0xf] %v1946
      %1995 = vst [vmem:[%s278 + $0x50] sm:$0xf] %v1947
      %1996 = vst [vmem:[%s278 + $0x54] sm:$0xf] %v1948
      %1997 = vst [vmem:[%s278 + $0x58] sm:$0xf] %v1949
      %1998 = vst [vmem:[%s278 + $0x5c] sm:$0xf] %v1950
      %s1999 = smul.u32 24, %s20
      %p2000 = scmp.lt.s32.totalorder %s19, 1
      %s2001 = scalar_select %p2000, %s19, 1
      %p2002 = scmp.lt.s32.totalorder %s1999, 47
      %s2003 = scalar_select %p2002, %s1999, 47
      %s2004 = smul.addr %s2001, 48
      %s2005 = sadd.s32 %s2003, %s2004
      %s2006 = smul.addr %s2005, 4
      %s2007 = scalar_lea.vmem %s4, %s2006
      // Predicated region
      $region37: #{conv_forward.1} parent=35 // pred_check
        %p2008 = pneg %p147
      $region38: #{conv_forward.1} parent=35 // pred_check_branch
        %2010 = sbr.rel (%p2008) target = $region40
      $region39: #{conv_forward.1} parent=35 // pred_region
        %s2011 = smul.u32 24, %s20
      $region40: #{conv_forward.1} parent=35 // pred_fallthru
        _
    $region36: #{conv_forward.1} parent=5 // pred_fallthru
      _
    %p2012 = scmp.le.s32.totalorder 2, %s10
    // Predicated region
    $region41: #{conv_forward.1} parent=5 // pred_check
      %p2013 = pneg %p2012
    $region42: #{conv_forward.1} parent=5 // pred_check_branch
      %2015 = sbr.rel (%p2013) target = $region44
    $region43: #{conv_forward.1} parent=5 // pred_region
      %s2016 = ssub.s32 %s10, 2
      // Predicated region
      $region45: #{conv_forward.1} parent=43 // pred_check
        %p2017 = pneg %p153
      $region46: #{conv_forward.1} parent=43 // pred_check_branch
        %2019 = sbr.rel (%p2017) target = $region48
      $region47: #{conv_forward.1} parent=43 // pred_region
        %s2020 = smul.u32 24, %s22
        %p2021 = scmp.lt.s32.totalorder %s21, 1
        %s2022 = scalar_select %p2021, %s21, 1
        %p2023 = scmp.lt.s32.totalorder %s2020, 47
        %s2024 = scalar_select %p2023, %s2020, 47
        %s2025 = smul.addr %s2022, 48
        %s2026 = sadd.s32 %s2024, %s2025
        %s2027 = smul.addr %s2026, 4
        %s2028 = scalar_lea.vmem %s4, %s2027
      $region48: #{conv_forward.1} parent=43 // pred_fallthru
        _
    $region44: #{conv_forward.1} parent=5 // pred_fallthru
      _
  $region6: #{conv_forward.1} parent=0 // loop_footer
    %s14 = sadd.s32 1, %s10
  $region7: #{conv_forward.1} parent=0 // loop_footer_branch
    %9 = sbr.rel target = $region3
  $region8: #{conv_forward.1} parent=0 // loop_exit
    _

</llo_original>
